<compile_context>
chip_gen: v6e
topology: v6e:2x2x1
jax: 0.10.0
libtpu: 0.0.40
codegen_flags: <defaults>
</compile_context>

<pallas_src>
import functools

import jax
import jax.numpy as jnp
from jax.experimental import pallas as pl
from jax.experimental.pallas import tpu as pltpu


def _round_up(v, m):
    return ((v + m - 1) // m) * m


def _mlp_kernel(x_ref, w1_ref, b1_ref, w2_ref, b2_ref, o_ref):
    # fc1 on the MXU, f32 accumulation regardless of storage dtype.
    h = jnp.dot(x_ref[...], w1_ref[...], preferred_element_type=jnp.float32)
    # Bias + ReLU in f32 on the VPU (lane-dense thanks to the packed layout).
    h = jnp.maximum(h + b1_ref[...], 0.0)
    # fc2: feed the MXU in the weights' (possibly bf16) dtype, f32 accumulate.
    y = jnp.dot(h.astype(w2_ref.dtype), w2_ref[...],
                preferred_element_type=jnp.float32)
    y = y + b2_ref[...]
    # sigmoid(y) = 1 / (1 + exp(-y)): exp and the approximate reciprocal both
    # land on the EUP slot, keeping the (tiny, lane-dense) tail off the VALUs.
    e = jnp.exp(-y)
    o_ref[...] = pl.reciprocal(1.0 + e, approx=True).astype(o_ref.dtype)


@functools.partial(
    jax.jit,
    static_argnames=("block_rows", "out_dtype", "vmem_limit_bytes"))
def edge_regression_mlp(x, w1, b1, w2, b2, *, block_rows=16384,
                        out_dtype=None, vmem_limit_bytes=None):
    """fc1 -> ReLU -> fc2 -> sigmoid over rows of x ([N, input_size]).

    x is consumed in its own dtype (pass bf16 x for the low-precision path);
    weights are cast to x.dtype; the output dtype defaults to x.dtype.
    block_rows is in original (unpacked) rows: 16k default, 32k-64k for very
    large N (raise vmem_limit_bytes on v5e for those).
    """
    n, in_dim = x.shape
    hidden = w1.shape[-1]
    out_dim = w2.shape[-1]
    if out_dtype is None:
        out_dtype = x.dtype

    # Lane-pack factor: fold `pack` rows into the 128-lane axis so the fc2 /
    # sigmoid / store tail is lane-dense (out_dim=8 -> pack=16 -> 128 lanes).
    pack = 128 // out_dim if (0 < out_dim <= 128 and 128 % out_dim == 0) else 1
    # Keep the block-diagonal fc1 weight (resident in VMEM) under ~4 MiB.
    while pack > 1 and (pack * in_dim) * (pack * hidden) * 4 > (4 << 20):
        pack //= 2

    # Block-diagonal weight expansion (tiny; computed once per call) and
    # tiled biases, all laid out to match the packed row order.
    param_dtype = x.dtype
    eye = jnp.eye(pack, dtype=jnp.float32)
    w1b = jnp.kron(eye, jnp.asarray(w1, jnp.float32)).astype(param_dtype)
    w2b = jnp.kron(eye, jnp.asarray(w2, jnp.float32)).astype(param_dtype)
    b1b = jnp.tile(jnp.asarray(b1, jnp.float32).reshape(1, hidden), (1, pack))
    b2b = jnp.tile(jnp.asarray(b2, jnp.float32).reshape(1, out_dim), (1, pack))

    # Pad rows only to the small pack factor (NOT the tile).  This copies x
    # only when N % pack != 0; supply pack-aligned N to stay copy-free.
    padded_n = _round_up(n, pack)
    if padded_n != n:
        x = jnp.pad(x, ((0, padded_n - n), (0, 0)))
    pn = padded_n // pack
    pin, phid, pout = pack * in_dim, pack * hidden, pack * out_dim
    xp = x.reshape(pn, pin)  # free row-major reshape (no data movement)

    # Packed-row tile: sublane-aligned; a single full-extent block for small
    # problems (always a legal BlockSpec); ragged last block is masked.
    bp = max(8, (max(block_rows, pack) // pack // 8) * 8)
    if bp >= pn:
        bp = pn
    grid = (pl.cdiv(pn, bp),)

    itemsize = lambda a: a.size * a.dtype.itemsize  # noqa: E731
    cost = pl.CostEstimate(
        flops=2 * padded_n * (in_dim * hidden + hidden * out_dim),
        transcendentals=padded_n * out_dim,
        bytes_accessed=int(itemsize(xp) + itemsize(w1b) + itemsize(w2b)
                           + itemsize(b1b) + itemsize(b2b)
                           + pn * pout * jnp.dtype(out_dtype).itemsize),
    )

    compiler_kwargs = dict(dimension_semantics=("parallel",))
    if vmem_limit_bytes is not None:
        compiler_kwargs["vmem_limit_bytes"] = int(vmem_limit_bytes)

    out = pl.pallas_call(
        _mlp_kernel,
        out_shape=jax.ShapeDtypeStruct((pn, pout), out_dtype),
        grid_spec=pltpu.PrefetchScalarGridSpec(
            num_scalar_prefetch=0,
            grid=grid,
            in_specs=[
                # x: tile over packed rows, full (lane-dense) feature dim.
                pl.BlockSpec((bp, pin), lambda i: (i, 0)),
                # Weights / biases: constant index_map -> fetched once,
                # resident across grid steps.
                pl.BlockSpec((pin, phid), lambda i: (0, 0)),
                pl.BlockSpec((1, phid), lambda i: (0, 0)),
                pl.BlockSpec((phid, pout), lambda i: (0, 0)),
                pl.BlockSpec((1, pout), lambda i: (0, 0)),
            ],
            out_specs=pl.BlockSpec((bp, pout), lambda i: (i, 0)),
        ),
        compiler_params=pltpu.CompilerParams(**compiler_kwargs),
        cost_estimate=cost,
    )(xp, w1b, b1b, w2b, b2b)

    # Free reshape back to (rows, out_dim); slice off pack padding if any.
    out = out.reshape(padded_n, out_dim)
    if padded_n != n:
        out = out[:n]
    return out


def _reference(x, w1, b1, w2, b2):
    xf = x.astype(jnp.float32)
    h = jnp.maximum(xf @ w1 + b1.reshape(1, -1), 0.0)
    return jax.nn.sigmoid(h @ w2 + b2.reshape(1, -1))


if __name__ == "__main__":
    # Shapes consistent with the module:
    #   input_size = 32, hidden_size = 64, output_size = 8
    N, INPUT_SIZE, HIDDEN_SIZE, OUTPUT_SIZE = 64, 32, 64, 8

    key = jax.random.PRNGKey(0)
    kx, k1, kb1, k2, kb2 = jax.random.split(key, 5)

    x = jax.random.normal(kx, (N, INPUT_SIZE), dtype=jnp.float32)

    # Deterministic synthetic parameters (Kaiming-ish scale like nn.Linear).
    w1 = jax.random.uniform(k1, (INPUT_SIZE, HIDDEN_SIZE), jnp.float32,
                            -1.0, 1.0) / jnp.sqrt(INPUT_SIZE)
    b1 = jax.random.uniform(kb1, (HIDDEN_SIZE,), jnp.float32,
                            -1.0, 1.0) / jnp.sqrt(INPUT_SIZE)
    w2 = jax.random.uniform(k2, (HIDDEN_SIZE, OUTPUT_SIZE), jnp.float32,
                            -1.0, 1.0) / jnp.sqrt(HIDDEN_SIZE)
    b2 = jax.random.uniform(kb2, (OUTPUT_SIZE,), jnp.float32,
                            -1.0, 1.0) / jnp.sqrt(HIDDEN_SIZE)

    # 1) Small demo (N=64): single full-extent block, f32 in / f32 out.
    out = jax.block_until_ready(edge_regression_mlp(x, w1, b1, w2, b2))
    ref = jax.block_until_ready(_reference(x, w1, b1, w2, b2))
    assert out.shape == (N, OUTPUT_SIZE)
    assert jnp.allclose(out, ref, atol=2e-3, rtol=0), "f32 small mismatch"

    # 2) Ragged N (1000 -> pack-padded to 1008), small tile so the grid has
    #    multiple steps and a masked boundary block.  f32.
    N2 = 1000
    x2 = jax.random.normal(jax.random.PRNGKey(1), (N2, INPUT_SIZE),
                           dtype=jnp.float32)
    out2 = jax.block_until_ready(
        edge_regression_mlp(x2, w1, b1, w2, b2, block_rows=256))
    ref2 = jax.block_until_ready(_reference(x2, w1, b1, w2, b2))
    assert out2.shape == (N2, OUTPUT_SIZE)
    assert jnp.allclose(out2, ref2, atol=2e-3, rtol=0), "f32 ragged mismatch"

    # 3) bf16 storage path: x arrives in bf16 (no wrapper cast), weights cast
    #    to bf16 inside, bf16 output; multi-step parallel grid.
    N3 = 4096
    x3 = jax.random.normal(jax.random.PRNGKey(2), (N3, INPUT_SIZE),
                           dtype=jnp.float32).astype(jnp.bfloat16)
    out3 = jax.block_until_ready(
        edge_regression_mlp(x3, w1, b1, w2, b2, block_rows=512))
    ref3 = jax.block_until_ready(_reference(x3, w1, b1, w2, b2))
    assert out3.shape == (N3, OUTPUT_SIZE)
    assert out3.dtype == jnp.bfloat16
    assert jnp.allclose(out3.astype(jnp.float32), ref3,
                        atol=3e-2, rtol=0), "bf16 path mismatch"

    print("KERNEL_OK")
</pallas_src>

<mosaic_0001>
module attributes {stable_mosaic.version = 11 : i64} {
  func.func @_mlp_kernel(%arg0: i32, %arg1: memref<4x512xf32, #tpu.memory_space<vmem>>, %arg2: memref<512x1024xf32, #tpu.memory_space<vmem>>, %arg3: memref<1x1024xf32, #tpu.memory_space<vmem>>, %arg4: memref<1024x128xf32, #tpu.memory_space<vmem>>, %arg5: memref<1x128xf32, #tpu.memory_space<vmem>>, %arg6: memref<4x128xf32, #tpu.memory_space<vmem>>) attributes {dimension_semantics = [#tpu.dimension_semantics<parallel>], iteration_bounds = array<i64: 1>, scalar_prefetch = 0 : i64, scratch_operands = 0 : i64, tpu.core_type = #tpu.core_type<tc>, window_params = [{transform_indices = @transform_0, window_bounds = array<i64: 4, 512>}, {pipeline_mode = #tpu.pipeline_mode<synchronous>, transform_indices = @transform_1, window_bounds = array<i64: 512, 1024>}, {pipeline_mode = #tpu.pipeline_mode<synchronous>, transform_indices = @transform_2, window_bounds = array<i64: 1, 1024>}, {pipeline_mode = #tpu.pipeline_mode<synchronous>, transform_indices = @transform_3, window_bounds = array<i64: 1024, 128>}, {pipeline_mode = #tpu.pipeline_mode<synchronous>, transform_indices = @transform_4, window_bounds = array<i64: 1, 128>}, {transform_indices = @transform_5, window_bounds = array<i64: 4, 128>}]} {
    %c0 = arith.constant 0 : index
    %c0_0 = arith.constant 0 : index
    %0 = vector.load %arg1[%c0, %c0_0] : memref<4x512xf32, #tpu.memory_space<vmem>>, vector<4x512xf32>
    %c0_1 = arith.constant 0 : index
    %c0_2 = arith.constant 0 : index
    %1 = vector.load %arg2[%c0_1, %c0_2] : memref<512x1024xf32, #tpu.memory_space<vmem>>, vector<512x1024xf32>
    %cst = arith.constant dense<0.000000e+00> : vector<4x1024xf32>
    %2 = tpu.matmul %0, %1, %cst {dimension_numbers = #tpu.dot_dimension_numbers<[1], [0], [0], [1], [0, 0, 1, 1], [], []>} : vector<4x512xf32>, vector<512x1024xf32>, vector<4x1024xf32> -> vector<4x1024xf32>
    %c0_3 = arith.constant 0 : index
    %c0_4 = arith.constant 0 : index
    %3 = vector.load %arg3[%c0_3, %c0_4] : memref<1x1024xf32, #tpu.memory_space<vmem>>, vector<1x1024xf32>
    %4 = vector.broadcast %3 : vector<1x1024xf32> to vector<4x1024xf32>
    %5 = arith.addf %2, %4 : vector<4x1024xf32>
    %cst_5 = arith.constant 0.000000e+00 : f32
    %6 = vector.broadcast %cst_5 : f32 to vector<4x1024xf32>
    %7 = arith.maximumf %5, %6 : vector<4x1024xf32>
    %c0_6 = arith.constant 0 : index
    %c0_7 = arith.constant 0 : index
    %8 = vector.load %arg4[%c0_6, %c0_7] : memref<1024x128xf32, #tpu.memory_space<vmem>>, vector<1024x128xf32>
    %cst_8 = arith.constant dense<0.000000e+00> : vector<4x128xf32>
    %9 = tpu.matmul %7, %8, %cst_8 {dimension_numbers = #tpu.dot_dimension_numbers<[1], [0], [0], [1], [0, 0, 1, 1], [], []>} : vector<4x1024xf32>, vector<1024x128xf32>, vector<4x128xf32> -> vector<4x128xf32>
    %c0_9 = arith.constant 0 : index
    %c0_10 = arith.constant 0 : index
    %10 = vector.load %arg5[%c0_9, %c0_10] : memref<1x128xf32, #tpu.memory_space<vmem>>, vector<1x128xf32>
    %11 = vector.broadcast %10 : vector<1x128xf32> to vector<4x128xf32>
    %12 = arith.addf %9, %11 : vector<4x128xf32>
    %cst_11 = arith.constant 0.000000e+00 : f32
    %13 = vector.broadcast %cst_11 : f32 to vector<4x128xf32>
    %14 = arith.subf %13, %12 : vector<4x128xf32>
    %15 = math.exp %14 : vector<4x128xf32>
    %cst_12 = arith.constant 1.000000e+00 : f32
    %16 = vector.broadcast %cst_12 : f32 to vector<4x128xf32>
    %17 = arith.addf %16, %15 : vector<4x128xf32>
    %18 = tpu.reciprocal %17 {approx = true} : vector<4x128xf32> -> vector<4x128xf32>
    %c0_13 = arith.constant 0 : index
    %c0_14 = arith.constant 0 : index
    %19 = vector.load %arg6[%c0_13, %c0_14] : memref<4x128xf32, #tpu.memory_space<vmem>>, vector<4x128xf32>
    tpu.vector_store %arg6[%c0_13, %c0_14], %18 {strides = array<i32>} : memref<4x128xf32, #tpu.memory_space<vmem>>, vector<4x128xf32>,
    return
  }
  func.func @transform_0(%arg0: i32) -> (i32, i32) {
    %c0_i32 = arith.constant 0 : i32
    %c0_i32_0 = arith.constant 0 : i32
    return %arg0, %c0_i32 : i32, i32
  }
  func.func @transform_1(%arg0: i32) -> (i32, i32) {
    %c0_i32 = arith.constant 0 : i32
    %c0_i32_0 = arith.constant 0 : i32
    %c0_i32_1 = arith.constant 0 : i32
    return %c0_i32, %c0_i32_0 : i32, i32
  }
  func.func @transform_2(%arg0: i32) -> (i32, i32) {
    %c0_i32 = arith.constant 0 : i32
    %c0_i32_0 = arith.constant 0 : i32
    %c0_i32_1 = arith.constant 0 : i32
    return %c0_i32, %c0_i32_0 : i32, i32
  }
  func.func @transform_3(%arg0: i32) -> (i32, i32) {
    %c0_i32 = arith.constant 0 : i32
    %c0_i32_0 = arith.constant 0 : i32
    %c0_i32_1 = arith.constant 0 : i32
    return %c0_i32, %c0_i32_0 : i32, i32
  }
  func.func @transform_4(%arg0: i32) -> (i32, i32) {
    %c0_i32 = arith.constant 0 : i32
    %c0_i32_0 = arith.constant 0 : i32
    %c0_i32_1 = arith.constant 0 : i32
    return %c0_i32, %c0_i32_0 : i32, i32
  }
  func.func @transform_5(%arg0: i32) -> (i32, i32) {
    %c0_i32 = arith.constant 0 : i32
    %c0_i32_0 = arith.constant 0 : i32
    return %arg0, %c0_i32 : i32, i32
  }
}

</mosaic_0001>

<llo_original>
// kernel: edge_regression_mlp.1
$region0: #{edge_regression_mlp.1}
  #allocation0 [shape = 'u32[]', space=smem, size = 0x4, offset = 0x4, fixed_abs, tag = 'smem constant byte address 0x4 - core index']
  #allocation1 [shape = 'u32[144,128]{1,0:T(1,128)}', space=vmem, size = 0x12000, scoped, tag = 'internal scratch']
  %s0 = inlined_call_operand.vmem [shape: f32[4,512], index: 0, kind: input, shape index: {}]
  %s1 = inlined_call_operand.vmem [shape: f32[512,1024], index: 1, kind: input, shape index: {}]
  %s2 = inlined_call_operand.vmem [shape: f32[1,1024], index: 2, kind: input, shape index: {}]
  %s3 = inlined_call_operand.vmem [shape: f32[1024,128], index: 3, kind: input, shape index: {}]
  %s4 = inlined_call_operand.vmem [shape: f32[1,128], index: 4, kind: input, shape index: {}]
  %s5 = inlined_call_operand.vmem [shape: f32[4,128], index: 5, kind: output, shape index: {}]
  %s6 = sld [smem:[#allocation0]]
  $region30: #{edge_regression_mlp.1} parent=0
    _
  %s8 = ssub.s32 1, %s6
  %s9 = scalar_select 0, %s8, %s6
  // Predicated region
  $region2: #{edge_regression_mlp.1} parent=0 // pred_check
    _
  $region3: #{edge_regression_mlp.1} parent=0 // pred_check_branch
    %11 = sbr.rel (0) target = $region5
  $region4: #{edge_regression_mlp.1} parent=0 // pred_region
    _
  $region5: #{edge_regression_mlp.1} parent=0 // pred_fallthru
    _
  // Predicated region
  $region6: #{edge_regression_mlp.1} parent=0 // pred_check
    _
  $region7: #{edge_regression_mlp.1} parent=0 // pred_check_branch
    %13 = sbr.rel (0) target = $region9
  $region8: #{edge_regression_mlp.1} parent=0 // pred_region
    _
  $region9: #{edge_regression_mlp.1} parent=0 // pred_fallthru
    _
  // Predicated region
  $region10: #{edge_regression_mlp.1} parent=0 // pred_check
    _
  $region11: #{edge_regression_mlp.1} parent=0 // pred_check_branch
    %15 = sbr.rel (0) target = $region13
  $region12: #{edge_regression_mlp.1} parent=0 // pred_region
    _
  $region13: #{edge_regression_mlp.1} parent=0 // pred_fallthru
    _
  // Predicated region
  $region14: #{edge_regression_mlp.1} parent=0 // pred_check
    _
  $region15: #{edge_regression_mlp.1} parent=0 // pred_check_branch
    %17 = sbr.rel (0) target = $region17
  $region16: #{edge_regression_mlp.1} parent=0 // pred_region
    _
  $region17: #{edge_regression_mlp.1} parent=0 // pred_fallthru
    _
  // Predicated region
  $region18: #{edge_regression_mlp.1} parent=0 // pred_check
    _
  $region19: #{edge_regression_mlp.1} parent=0 // pred_check_branch
    %19 = sbr.rel (0) target = $region21
  $region20: #{edge_regression_mlp.1} parent=0 // pred_region
    _
  $region21: #{edge_regression_mlp.1} parent=0 // pred_fallthru
    _
  %v20 = vld [vmem:[%s0] sm:$0xff]
  %v21 = vld [vmem:[%s0 + $0x8] sm:$0xff]
  %v22 = vld [vmem:[%s1] sm:$0xff]
  %v23 = vld [vmem:[%s1 + $0x8] sm:$0xff]
  %v24 = vld [vmem:[%s1 + $0x10] sm:$0xff]
  %v25 = vld [vmem:[%s1 + $0x18] sm:$0xff]
  %v26 = vld [vmem:[%s1 + $0x20] sm:$0xff]
  %v27 = vld [vmem:[%s1 + $0x28] sm:$0xff]
  %v28 = vld [vmem:[%s1 + $0x30] sm:$0xff]
  %v29 = vld [vmem:[%s1 + $0x38] sm:$0xff]
  %v30 = vld [vmem:[%s1 + $0x40] sm:$0xff]
  %v31 = vld [vmem:[%s1 + $0x48] sm:$0xff]
  %v32 = vld [vmem:[%s1 + $0x50] sm:$0xff]
  %v33 = vld [vmem:[%s1 + $0x58] sm:$0xff]
  %v34 = vld [vmem:[%s1 + $0x60] sm:$0xff]
  %v35 = vld [vmem:[%s1 + $0x68] sm:$0xff]
  %v36 = vld [vmem:[%s1 + $0x70] sm:$0xff]
  %v37 = vld [vmem:[%s1 + $0x78] sm:$0xff]
  %v38 = vld [vmem:[%s1 + $0x80] sm:$0xff]
  %v39 = vld [vmem:[%s1 + $0x88] sm:$0xff]
  %v40 = vld [vmem:[%s1 + $0x90] sm:$0xff]
  %v41 = vld [vmem:[%s1 + $0x98] sm:$0xff]
  %v42 = vld [vmem:[%s1 + $0xa0] sm:$0xff]
  %v43 = vld [vmem:[%s1 + $0xa8] sm:$0xff]
  %v44 = vld [vmem:[%s1 + $0xb0] sm:$0xff]
  %v45 = vld [vmem:[%s1 + $0xb8] sm:$0xff]
  %v46 = vld [vmem:[%s1 + $0xc0] sm:$0xff]
  %v47 = vld [vmem:[%s1 + $0xc8] sm:$0xff]
  %v48 = vld [vmem:[%s1 + $0xd0] sm:$0xff]
  %v49 = vld [vmem:[%s1 + $0xd8] sm:$0xff]
  %v50 = vld [vmem:[%s1 + $0xe0] sm:$0xff]
  %v51 = vld [vmem:[%s1 + $0xe8] sm:$0xff]
  %v52 = vld [vmem:[%s1 + $0xf0] sm:$0xff]
  %v53 = vld [vmem:[%s1 + $0xf8] sm:$0xff]
  %v54 = vld [vmem:[%s1 + $0x100] sm:$0xff]
  %v55 = vld [vmem:[%s1 + $0x108] sm:$0xff]
  %v56 = vld [vmem:[%s1 + $0x110] sm:$0xff]
  %v57 = vld [vmem:[%s1 + $0x118] sm:$0xff]
  %v58 = vld [vmem:[%s1 + $0x120] sm:$0xff]
  %v59 = vld [vmem:[%s1 + $0x128] sm:$0xff]
  %v60 = vld [vmem:[%s1 + $0x130] sm:$0xff]
  %v61 = vld [vmem:[%s1 + $0x138] sm:$0xff]
  %v62 = vld [vmem:[%s1 + $0x140] sm:$0xff]
  %v63 = vld [vmem:[%s1 + $0x148] sm:$0xff]
  %v64 = vld [vmem:[%s1 + $0x150] sm:$0xff]
  %v65 = vld [vmem:[%s1 + $0x158] sm:$0xff]
  %v66 = vld [vmem:[%s1 + $0x160] sm:$0xff]
  %v67 = vld [vmem:[%s1 + $0x168] sm:$0xff]
  %v68 = vld [vmem:[%s1 + $0x170] sm:$0xff]
  %v69 = vld [vmem:[%s1 + $0x178] sm:$0xff]
  %v70 = vld [vmem:[%s1 + $0x180] sm:$0xff]
  %v71 = vld [vmem:[%s1 + $0x188] sm:$0xff]
  %v72 = vld [vmem:[%s1 + $0x190] sm:$0xff]
  %v73 = vld [vmem:[%s1 + $0x198] sm:$0xff]
  %v74 = vld [vmem:[%s1 + $0x1a0] sm:$0xff]
  %v75 = vld [vmem:[%s1 + $0x1a8] sm:$0xff]
  %v76 = vld [vmem:[%s1 + $0x1b0] sm:$0xff]
  %v77 = vld [vmem:[%s1 + $0x1b8] sm:$0xff]
  %v78 = vld [vmem:[%s1 + $0x1c0] sm:$0xff]
  %v79 = vld [vmem:[%s1 + $0x1c8] sm:$0xff]
  %v80 = vld [vmem:[%s1 + $0x1d0] sm:$0xff]
  %v81 = vld [vmem:[%s1 + $0x1d8] sm:$0xff]
  %v82 = vld [vmem:[%s1 + $0x1e0] sm:$0xff]
  %v83 = vld [vmem:[%s1 + $0x1e8] sm:$0xff]
  %v84 = vld [vmem:[%s1 + $0x1f0] sm:$0xff]
  %v85 = vld [vmem:[%s1 + $0x1f8] sm:$0xff]
  %v86 = vld [vmem:[%s1 + $0x200] sm:$0xff]
  %v87 = vld [vmem:[%s1 + $0x208] sm:$0xff]
  %v88 = vld [vmem:[%s1 + $0x210] sm:$0xff]
  %v89 = vld [vmem:[%s1 + $0x218] sm:$0xff]
  %v90 = vld [vmem:[%s1 + $0x220] sm:$0xff]
  %v91 = vld [vmem:[%s1 + $0x228] sm:$0xff]
  %v92 = vld [vmem:[%s1 + $0x230] sm:$0xff]
  %v93 = vld [vmem:[%s1 + $0x238] sm:$0xff]
  %v94 = vld [vmem:[%s1 + $0x240] sm:$0xff]
  %v95 = vld [vmem:[%s1 + $0x248] sm:$0xff]
  %v96 = vld [vmem:[%s1 + $0x250] sm:$0xff]
  %v97 = vld [vmem:[%s1 + $0x258] sm:$0xff]
  %v98 = vld [vmem:[%s1 + $0x260] sm:$0xff]
  %v99 = vld [vmem:[%s1 + $0x268] sm:$0xff]
  %v100 = vld [vmem:[%s1 + $0x270] sm:$0xff]
  %v101 = vld [vmem:[%s1 + $0x278] sm:$0xff]
  %v102 = vld [vmem:[%s1 + $0x280] sm:$0xff]
  %v103 = vld [vmem:[%s1 + $0x288] sm:$0xff]
  %v104 = vld [vmem:[%s1 + $0x290] sm:$0xff]
  %v105 = vld [vmem:[%s1 + $0x298] sm:$0xff]
  %v106 = vld [vmem:[%s1 + $0x2a0] sm:$0xff]
  %v107 = vld [vmem:[%s1 + $0x2a8] sm:$0xff]
  %v108 = vld [vmem:[%s1 + $0x2b0] sm:$0xff]
  %v109 = vld [vmem:[%s1 + $0x2b8] sm:$0xff]
  %v110 = vld [vmem:[%s1 + $0x2c0] sm:$0xff]
  %v111 = vld [vmem:[%s1 + $0x2c8] sm:$0xff]
  %v112 = vld [vmem:[%s1 + $0x2d0] sm:$0xff]
  %v113 = vld [vmem:[%s1 + $0x2d8] sm:$0xff]
  %v114 = vld [vmem:[%s1 + $0x2e0] sm:$0xff]
  %v115 = vld [vmem:[%s1 + $0x2e8] sm:$0xff]
  %v116 = vld [vmem:[%s1 + $0x2f0] sm:$0xff]
  %v117 = vld [vmem:[%s1 + $0x2f8] sm:$0xff]
  %v118 = vld [vmem:[%s1 + $0x300] sm:$0xff]
  %v119 = vld [vmem:[%s1 + $0x308] sm:$0xff]
  %v120 = vld [vmem:[%s1 + $0x310] sm:$0xff]
  %v121 = vld [vmem:[%s1 + $0x318] sm:$0xff]
  %v122 = vld [vmem:[%s1 + $0x320] sm:$0xff]
  %v123 = vld [vmem:[%s1 + $0x328] sm:$0xff]
  %v124 = vld [vmem:[%s1 + $0x330] sm:$0xff]
  %v125 = vld [vmem:[%s1 + $0x338] sm:$0xff]
  %v126 = vld [vmem:[%s1 + $0x340] sm:$0xff]
  %v127 = vld [vmem:[%s1 + $0x348] sm:$0xff]
  %v128 = vld [vmem:[%s1 + $0x350] sm:$0xff]
  %v129 = vld [vmem:[%s1 + $0x358] sm:$0xff]
  %v130 = vld [vmem:[%s1 + $0x360] sm:$0xff]
  %v131 = vld [vmem:[%s1 + $0x368] sm:$0xff]
  %v132 = vld [vmem:[%s1 + $0x370] sm:$0xff]
  %v133 = vld [vmem:[%s1 + $0x378] sm:$0xff]
  %v134 = vld [vmem:[%s1 + $0x380] sm:$0xff]
  %v135 = vld [vmem:[%s1 + $0x388] sm:$0xff]
  %v136 = vld [vmem:[%s1 + $0x390] sm:$0xff]
  %v137 = vld [vmem:[%s1 + $0x398] sm:$0xff]
  %v138 = vld [vmem:[%s1 + $0x3a0] sm:$0xff]
  %v139 = vld [vmem:[%s1 + $0x3a8] sm:$0xff]
  %v140 = vld [vmem:[%s1 + $0x3b0] sm:$0xff]
  %v141 = vld [vmem:[%s1 + $0x3b8] sm:$0xff]
  %v142 = vld [vmem:[%s1 + $0x3c0] sm:$0xff]
  %v143 = vld [vmem:[%s1 + $0x3c8] sm:$0xff]
  %v144 = vld [vmem:[%s1 + $0x3d0] sm:$0xff]
  %v145 = vld [vmem:[%s1 + $0x3d8] sm:$0xff]
  %v146 = vld [vmem:[%s1 + $0x3e0] sm:$0xff]
  %v147 = vld [vmem:[%s1 + $0x3e8] sm:$0xff]
  %v148 = vld [vmem:[%s1 + $0x3f0] sm:$0xff]
  %v149 = vld [vmem:[%s1 + $0x3f8] sm:$0xff]
  %v150 = vld [vmem:[%s1 + $0x400] sm:$0xff]
  %v151 = vld [vmem:[%s1 + $0x408] sm:$0xff]
  %v152 = vld [vmem:[%s1 + $0x410] sm:$0xff]
  %v153 = vld [vmem:[%s1 + $0x418] sm:$0xff]
  %v154 = vld [vmem:[%s1 + $0x420] sm:$0xff]
  %v155 = vld [vmem:[%s1 + $0x428] sm:$0xff]
  %v156 = vld [vmem:[%s1 + $0x430] sm:$0xff]
  %v157 = vld [vmem:[%s1 + $0x438] sm:$0xff]
  %v158 = vld [vmem:[%s1 + $0x440] sm:$0xff]
  %v159 = vld [vmem:[%s1 + $0x448] sm:$0xff]
  %v160 = vld [vmem:[%s1 + $0x450] sm:$0xff]
  %v161 = vld [vmem:[%s1 + $0x458] sm:$0xff]
  %v162 = vld [vmem:[%s1 + $0x460] sm:$0xff]
  %v163 = vld [vmem:[%s1 + $0x468] sm:$0xff]
  %v164 = vld [vmem:[%s1 + $0x470] sm:$0xff]
  %v165 = vld [vmem:[%s1 + $0x478] sm:$0xff]
  %v166 = vld [vmem:[%s1 + $0x480] sm:$0xff]
  %v167 = vld [vmem:[%s1 + $0x488] sm:$0xff]
  %v168 = vld [vmem:[%s1 + $0x490] sm:$0xff]
  %v169 = vld [vmem:[%s1 + $0x498] sm:$0xff]
  %v170 = vld [vmem:[%s1 + $0x4a0] sm:$0xff]
  %v171 = vld [vmem:[%s1 + $0x4a8] sm:$0xff]
  %v172 = vld [vmem:[%s1 + $0x4b0] sm:$0xff]
  %v173 = vld [vmem:[%s1 + $0x4b8] sm:$0xff]
  %v174 = vld [vmem:[%s1 + $0x4c0] sm:$0xff]
  %v175 = vld [vmem:[%s1 + $0x4c8] sm:$0xff]
  %v176 = vld [vmem:[%s1 + $0x4d0] sm:$0xff]
  %v177 = vld [vmem:[%s1 + $0x4d8] sm:$0xff]
  %v178 = vld [vmem:[%s1 + $0x4e0] sm:$0xff]
  %v179 = vld [vmem:[%s1 + $0x4e8] sm:$0xff]
  %v180 = vld [vmem:[%s1 + $0x4f0] sm:$0xff]
  %v181 = vld [vmem:[%s1 + $0x4f8] sm:$0xff]
  %v182 = vld [vmem:[%s1 + $0x500] sm:$0xff]
  %v183 = vld [vmem:[%s1 + $0x508] sm:$0xff]
  %v184 = vld [vmem:[%s1 + $0x510] sm:$0xff]
  %v185 = vld [vmem:[%s1 + $0x518] sm:$0xff]
  %v186 = vld [vmem:[%s1 + $0x520] sm:$0xff]
  %v187 = vld [vmem:[%s1 + $0x528] sm:$0xff]
  %v188 = vld [vmem:[%s1 + $0x530] sm:$0xff]
  %v189 = vld [vmem:[%s1 + $0x538] sm:$0xff]
  %v190 = vld [vmem:[%s1 + $0x540] sm:$0xff]
  %v191 = vld [vmem:[%s1 + $0x548] sm:$0xff]
  %v192 = vld [vmem:[%s1 + $0x550] sm:$0xff]
  %v193 = vld [vmem:[%s1 + $0x558] sm:$0xff]
  %v194 = vld [vmem:[%s1 + $0x560] sm:$0xff]
  %v195 = vld [vmem:[%s1 + $0x568] sm:$0xff]
  %v196 = vld [vmem:[%s1 + $0x570] sm:$0xff]
  %v197 = vld [vmem:[%s1 + $0x578] sm:$0xff]
  %v198 = vld [vmem:[%s1 + $0x580] sm:$0xff]
  %v199 = vld [vmem:[%s1 + $0x588] sm:$0xff]
  %v200 = vld [vmem:[%s1 + $0x590] sm:$0xff]
  %v201 = vld [vmem:[%s1 + $0x598] sm:$0xff]
  %v202 = vld [vmem:[%s1 + $0x5a0] sm:$0xff]
  %v203 = vld [vmem:[%s1 + $0x5a8] sm:$0xff]
  %v204 = vld [vmem:[%s1 + $0x5b0] sm:$0xff]
  %v205 = vld [vmem:[%s1 + $0x5b8] sm:$0xff]
  %v206 = vld [vmem:[%s1 + $0x5c0] sm:$0xff]
  %v207 = vld [vmem:[%s1 + $0x5c8] sm:$0xff]
  %v208 = vld [vmem:[%s1 + $0x5d0] sm:$0xff]
  %v209 = vld [vmem:[%s1 + $0x5d8] sm:$0xff]
  %v210 = vld [vmem:[%s1 + $0x5e0] sm:$0xff]
  %v211 = vld [vmem:[%s1 + $0x5e8] sm:$0xff]
  %v212 = vld [vmem:[%s1 + $0x5f0] sm:$0xff]
  %v213 = vld [vmem:[%s1 + $0x5f8] sm:$0xff]
  %v214 = vld [vmem:[%s1 + $0x600] sm:$0xff]
  %v215 = vld [vmem:[%s1 + $0x608] sm:$0xff]
  %v216 = vld [vmem:[%s1 + $0x610] sm:$0xff]
  %v217 = vld [vmem:[%s1 + $0x618] sm:$0xff]
  %v218 = vld [vmem:[%s1 + $0x620] sm:$0xff]
  %v219 = vld [vmem:[%s1 + $0x628] sm:$0xff]
  %v220 = vld [vmem:[%s1 + $0x630] sm:$0xff]
  %v221 = vld [vmem:[%s1 + $0x638] sm:$0xff]
  %v222 = vld [vmem:[%s1 + $0x640] sm:$0xff]
  %v223 = vld [vmem:[%s1 + $0x648] sm:$0xff]
  %v224 = vld [vmem:[%s1 + $0x650] sm:$0xff]
  %v225 = vld [vmem:[%s1 + $0x658] sm:$0xff]
  %v226 = vld [vmem:[%s1 + $0x660] sm:$0xff]
  %v227 = vld [vmem:[%s1 + $0x668] sm:$0xff]
  %v228 = vld [vmem:[%s1 + $0x670] sm:$0xff]
  %v229 = vld [vmem:[%s1 + $0x678] sm:$0xff]
  %v230 = vld [vmem:[%s1 + $0x680] sm:$0xff]
  %v231 = vld [vmem:[%s1 + $0x688] sm:$0xff]
  %v232 = vld [vmem:[%s1 + $0x690] sm:$0xff]
  %v233 = vld [vmem:[%s1 + $0x698] sm:$0xff]
  %v234 = vld [vmem:[%s1 + $0x6a0] sm:$0xff]
  %v235 = vld [vmem:[%s1 + $0x6a8] sm:$0xff]
  %v236 = vld [vmem:[%s1 + $0x6b0] sm:$0xff]
  %v237 = vld [vmem:[%s1 + $0x6b8] sm:$0xff]
  %v238 = vld [vmem:[%s1 + $0x6c0] sm:$0xff]
  %v239 = vld [vmem:[%s1 + $0x6c8] sm:$0xff]
  %v240 = vld [vmem:[%s1 + $0x6d0] sm:$0xff]
  %v241 = vld [vmem:[%s1 + $0x6d8] sm:$0xff]
  %v242 = vld [vmem:[%s1 + $0x6e0] sm:$0xff]
  %v243 = vld [vmem:[%s1 + $0x6e8] sm:$0xff]
  %v244 = vld [vmem:[%s1 + $0x6f0] sm:$0xff]
  %v245 = vld [vmem:[%s1 + $0x6f8] sm:$0xff]
  %v246 = vld [vmem:[%s1 + $0x700] sm:$0xff]
  %v247 = vld [vmem:[%s1 + $0x708] sm:$0xff]
  %v248 = vld [vmem:[%s1 + $0x710] sm:$0xff]
  %v249 = vld [vmem:[%s1 + $0x718] sm:$0xff]
  %v250 = vld [vmem:[%s1 + $0x720] sm:$0xff]
  %v251 = vld [vmem:[%s1 + $0x728] sm:$0xff]
  %v252 = vld [vmem:[%s1 + $0x730] sm:$0xff]
  %v253 = vld [vmem:[%s1 + $0x738] sm:$0xff]
  %v254 = vld [vmem:[%s1 + $0x740] sm:$0xff]
  %v255 = vld [vmem:[%s1 + $0x748] sm:$0xff]
  %v256 = vld [vmem:[%s1 + $0x750] sm:$0xff]
  %v257 = vld [vmem:[%s1 + $0x758] sm:$0xff]
  %v258 = vld [vmem:[%s1 + $0x760] sm:$0xff]
  %v259 = vld [vmem:[%s1 + $0x768] sm:$0xff]
  %v260 = vld [vmem:[%s1 + $0x770] sm:$0xff]
  %v261 = vld [vmem:[%s1 + $0x778] sm:$0xff]
  %v262 = vld [vmem:[%s1 + $0x780] sm:$0xff]
  %v263 = vld [vmem:[%s1 + $0x788] sm:$0xff]
  %v264 = vld [vmem:[%s1 + $0x790] sm:$0xff]
  %v265 = vld [vmem:[%s1 + $0x798] sm:$0xff]
  %v266 = vld [vmem:[%s1 + $0x7a0] sm:$0xff]
  %v267 = vld [vmem:[%s1 + $0x7a8] sm:$0xff]
  %v268 = vld [vmem:[%s1 + $0x7b0] sm:$0xff]
  %v269 = vld [vmem:[%s1 + $0x7b8] sm:$0xff]
  %v270 = vld [vmem:[%s1 + $0x7c0] sm:$0xff]
  %v271 = vld [vmem:[%s1 + $0x7c8] sm:$0xff]
  %v272 = vld [vmem:[%s1 + $0x7d0] sm:$0xff]
  %v273 = vld [vmem:[%s1 + $0x7d8] sm:$0xff]
  %v274 = vld [vmem:[%s1 + $0x7e0] sm:$0xff]
  %v275 = vld [vmem:[%s1 + $0x7e8] sm:$0xff]
  %v276 = vld [vmem:[%s1 + $0x7f0] sm:$0xff]
  %v277 = vld [vmem:[%s1 + $0x7f8] sm:$0xff]
  %v278 = vld [vmem:[%s1 + $0x800] sm:$0xff]
  %v279 = vld [vmem:[%s1 + $0x808] sm:$0xff]
  %v280 = vld [vmem:[%s1 + $0x810] sm:$0xff]
  %v281 = vld [vmem:[%s1 + $0x818] sm:$0xff]
  %v282 = vld [vmem:[%s1 + $0x820] sm:$0xff]
  %v283 = vld [vmem:[%s1 + $0x828] sm:$0xff]
  %v284 = vld [vmem:[%s1 + $0x830] sm:$0xff]
  %v285 = vld [vmem:[%s1 + $0x838] sm:$0xff]
  %v286 = vld [vmem:[%s1 + $0x840] sm:$0xff]
  %v287 = vld [vmem:[%s1 + $0x848] sm:$0xff]
  %v288 = vld [vmem:[%s1 + $0x850] sm:$0xff]
  %v289 = vld [vmem:[%s1 + $0x858] sm:$0xff]
  %v290 = vld [vmem:[%s1 + $0x860] sm:$0xff]
  %v291 = vld [vmem:[%s1 + $0x868] sm:$0xff]
  %v292 = vld [vmem:[%s1 + $0x870] sm:$0xff]
  %v293 = vld [vmem:[%s1 + $0x878] sm:$0xff]
  %v294 = vld [vmem:[%s1 + $0x880] sm:$0xff]
  %v295 = vld [vmem:[%s1 + $0x888] sm:$0xff]
  %v296 = vld [vmem:[%s1 + $0x890] sm:$0xff]
  %v297 = vld [vmem:[%s1 + $0x898] sm:$0xff]
  %v298 = vld [vmem:[%s1 + $0x8a0] sm:$0xff]
  %v299 = vld [vmem:[%s1 + $0x8a8] sm:$0xff]
  %v300 = vld [vmem:[%s1 + $0x8b0] sm:$0xff]
  %v301 = vld [vmem:[%s1 + $0x8b8] sm:$0xff]
  %v302 = vld [vmem:[%s1 + $0x8c0] sm:$0xff]
  %v303 = vld [vmem:[%s1 + $0x8c8] sm:$0xff]
  %v304 = vld [vmem:[%s1 + $0x8d0] sm:$0xff]
  %v305 = vld [vmem:[%s1 + $0x8d8] sm:$0xff]
  %v306 = vld [vmem:[%s1 + $0x8e0] sm:$0xff]
  %v307 = vld [vmem:[%s1 + $0x8e8] sm:$0xff]
  %v308 = vld [vmem:[%s1 + $0x8f0] sm:$0xff]
  %v309 = vld [vmem:[%s1 + $0x8f8] sm:$0xff]
  %v310 = vld [vmem:[%s1 + $0x900] sm:$0xff]
  %v311 = vld [vmem:[%s1 + $0x908] sm:$0xff]
  %v312 = vld [vmem:[%s1 + $0x910] sm:$0xff]
  %v313 = vld [vmem:[%s1 + $0x918] sm:$0xff]
  %v314 = vld [vmem:[%s1 + $0x920] sm:$0xff]
  %v315 = vld [vmem:[%s1 + $0x928] sm:$0xff]
  %v316 = vld [vmem:[%s1 + $0x930] sm:$0xff]
  %v317 = vld [vmem:[%s1 + $0x938] sm:$0xff]
  %v318 = vld [vmem:[%s1 + $0x940] sm:$0xff]
  %v319 = vld [vmem:[%s1 + $0x948] sm:$0xff]
  %v320 = vld [vmem:[%s1 + $0x950] sm:$0xff]
  %v321 = vld [vmem:[%s1 + $0x958] sm:$0xff]
  %v322 = vld [vmem:[%s1 + $0x960] sm:$0xff]
  %v323 = vld [vmem:[%s1 + $0x968] sm:$0xff]
  %v324 = vld [vmem:[%s1 + $0x970] sm:$0xff]
  %v325 = vld [vmem:[%s1 + $0x978] sm:$0xff]
  %v326 = vld [vmem:[%s1 + $0x980] sm:$0xff]
  %v327 = vld [vmem:[%s1 + $0x988] sm:$0xff]
  %v328 = vld [vmem:[%s1 + $0x990] sm:$0xff]
  %v329 = vld [vmem:[%s1 + $0x998] sm:$0xff]
  %v330 = vld [vmem:[%s1 + $0x9a0] sm:$0xff]
  %v331 = vld [vmem:[%s1 + $0x9a8] sm:$0xff]
  %v332 = vld [vmem:[%s1 + $0x9b0] sm:$0xff]
  %v333 = vld [vmem:[%s1 + $0x9b8] sm:$0xff]
  %v334 = vld [vmem:[%s1 + $0x9c0] sm:$0xff]
  %v335 = vld [vmem:[%s1 + $0x9c8] sm:$0xff]
  %v336 = vld [vmem:[%s1 + $0x9d0] sm:$0xff]
  %v337 = vld [vmem:[%s1 + $0x9d8] sm:$0xff]
  %v338 = vld [vmem:[%s1 + $0x9e0] sm:$0xff]
  %v339 = vld [vmem:[%s1 + $0x9e8] sm:$0xff]
  %v340 = vld [vmem:[%s1 + $0x9f0] sm:$0xff]
  %v341 = vld [vmem:[%s1 + $0x9f8] sm:$0xff]
  %v342 = vld [vmem:[%s1 + $0xa00] sm:$0xff]
  %v343 = vld [vmem:[%s1 + $0xa08] sm:$0xff]
  %v344 = vld [vmem:[%s1 + $0xa10] sm:$0xff]
  %v345 = vld [vmem:[%s1 + $0xa18] sm:$0xff]
  %v346 = vld [vmem:[%s1 + $0xa20] sm:$0xff]
  %v347 = vld [vmem:[%s1 + $0xa28] sm:$0xff]
  %v348 = vld [vmem:[%s1 + $0xa30] sm:$0xff]
  %v349 = vld [vmem:[%s1 + $0xa38] sm:$0xff]
  %v350 = vld [vmem:[%s1 + $0xa40] sm:$0xff]
  %v351 = vld [vmem:[%s1 + $0xa48] sm:$0xff]
  %v352 = vld [vmem:[%s1 + $0xa50] sm:$0xff]
  %v353 = vld [vmem:[%s1 + $0xa58] sm:$0xff]
  %v354 = vld [vmem:[%s1 + $0xa60] sm:$0xff]
  %v355 = vld [vmem:[%s1 + $0xa68] sm:$0xff]
  %v356 = vld [vmem:[%s1 + $0xa70] sm:$0xff]
  %v357 = vld [vmem:[%s1 + $0xa78] sm:$0xff]
  %v358 = vld [vmem:[%s1 + $0xa80] sm:$0xff]
  %v359 = vld [vmem:[%s1 + $0xa88] sm:$0xff]
  %v360 = vld [vmem:[%s1 + $0xa90] sm:$0xff]
  %v361 = vld [vmem:[%s1 + $0xa98] sm:$0xff]
  %v362 = vld [vmem:[%s1 + $0xaa0] sm:$0xff]
  %v363 = vld [vmem:[%s1 + $0xaa8] sm:$0xff]
  %v364 = vld [vmem:[%s1 + $0xab0] sm:$0xff]
  %v365 = vld [vmem:[%s1 + $0xab8] sm:$0xff]
  %v366 = vld [vmem:[%s1 + $0xac0] sm:$0xff]
  %v367 = vld [vmem:[%s1 + $0xac8] sm:$0xff]
  %v368 = vld [vmem:[%s1 + $0xad0] sm:$0xff]
  %v369 = vld [vmem:[%s1 + $0xad8] sm:$0xff]
  %v370 = vld [vmem:[%s1 + $0xae0] sm:$0xff]
  %v371 = vld [vmem:[%s1 + $0xae8] sm:$0xff]
  %v372 = vld [vmem:[%s1 + $0xaf0] sm:$0xff]
  %v373 = vld [vmem:[%s1 + $0xaf8] sm:$0xff]
  %v374 = vld [vmem:[%s1 + $0xb00] sm:$0xff]
  %v375 = vld [vmem:[%s1 + $0xb08] sm:$0xff]
  %v376 = vld [vmem:[%s1 + $0xb10] sm:$0xff]
  %v377 = vld [vmem:[%s1 + $0xb18] sm:$0xff]
  %v378 = vld [vmem:[%s1 + $0xb20] sm:$0xff]
  %v379 = vld [vmem:[%s1 + $0xb28] sm:$0xff]
  %v380 = vld [vmem:[%s1 + $0xb30] sm:$0xff]
  %v381 = vld [vmem:[%s1 + $0xb38] sm:$0xff]
  %v382 = vld [vmem:[%s1 + $0xb40] sm:$0xff]
  %v383 = vld [vmem:[%s1 + $0xb48] sm:$0xff]
  %v384 = vld [vmem:[%s1 + $0xb50] sm:$0xff]
  %v385 = vld [vmem:[%s1 + $0xb58] sm:$0xff]
  %v386 = vld [vmem:[%s1 + $0xb60] sm:$0xff]
  %v387 = vld [vmem:[%s1 + $0xb68] sm:$0xff]
  %v388 = vld [vmem:[%s1 + $0xb70] sm:$0xff]
  %v389 = vld [vmem:[%s1 + $0xb78] sm:$0xff]
  %v390 = vld [vmem:[%s1 + $0xb80] sm:$0xff]
  %v391 = vld [vmem:[%s1 + $0xb88] sm:$0xff]
  %v392 = vld [vmem:[%s1 + $0xb90] sm:$0xff]
  %v393 = vld [vmem:[%s1 + $0xb98] sm:$0xff]
  %v394 = vld [vmem:[%s1 + $0xba0] sm:$0xff]
  %v395 = vld [vmem:[%s1 + $0xba8] sm:$0xff]
  %v396 = vld [vmem:[%s1 + $0xbb0] sm:$0xff]
  %v397 = vld [vmem:[%s1 + $0xbb8] sm:$0xff]
  %v398 = vld [vmem:[%s1 + $0xbc0] sm:$0xff]
  %v399 = vld [vmem:[%s1 + $0xbc8] sm:$0xff]
  %v400 = vld [vmem:[%s1 + $0xbd0] sm:$0xff]
  %v401 = vld [vmem:[%s1 + $0xbd8] sm:$0xff]
  %v402 = vld [vmem:[%s1 + $0xbe0] sm:$0xff]
  %v403 = vld [vmem:[%s1 + $0xbe8] sm:$0xff]
  %v404 = vld [vmem:[%s1 + $0xbf0] sm:$0xff]
  %v405 = vld [vmem:[%s1 + $0xbf8] sm:$0xff]
  %v406 = vld [vmem:[%s1 + $0xc00] sm:$0xff]
  %v407 = vld [vmem:[%s1 + $0xc08] sm:$0xff]
  %v408 = vld [vmem:[%s1 + $0xc10] sm:$0xff]
  %v409 = vld [vmem:[%s1 + $0xc18] sm:$0xff]
  %v410 = vld [vmem:[%s1 + $0xc20] sm:$0xff]
  %v411 = vld [vmem:[%s1 + $0xc28] sm:$0xff]
  %v412 = vld [vmem:[%s1 + $0xc30] sm:$0xff]
  %v413 = vld [vmem:[%s1 + $0xc38] sm:$0xff]
  %v414 = vld [vmem:[%s1 + $0xc40] sm:$0xff]
  %v415 = vld [vmem:[%s1 + $0xc48] sm:$0xff]
  %v416 = vld [vmem:[%s1 + $0xc50] sm:$0xff]
  %v417 = vld [vmem:[%s1 + $0xc58] sm:$0xff]
  %v418 = vld [vmem:[%s1 + $0xc60] sm:$0xff]
  %v419 = vld [vmem:[%s1 + $0xc68] sm:$0xff]
  %v420 = vld [vmem:[%s1 + $0xc70] sm:$0xff]
  %v421 = vld [vmem:[%s1 + $0xc78] sm:$0xff]
  %v422 = vld [vmem:[%s1 + $0xc80] sm:$0xff]
  %v423 = vld [vmem:[%s1 + $0xc88] sm:$0xff]
  %v424 = vld [vmem:[%s1 + $0xc90] sm:$0xff]
  %v425 = vld [vmem:[%s1 + $0xc98] sm:$0xff]
  %v426 = vld [vmem:[%s1 + $0xca0] sm:$0xff]
  %v427 = vld [vmem:[%s1 + $0xca8] sm:$0xff]
  %v428 = vld [vmem:[%s1 + $0xcb0] sm:$0xff]
  %v429 = vld [vmem:[%s1 + $0xcb8] sm:$0xff]
  %v430 = vld [vmem:[%s1 + $0xcc0] sm:$0xff]
  %v431 = vld [vmem:[%s1 + $0xcc8] sm:$0xff]
  %v432 = vld [vmem:[%s1 + $0xcd0] sm:$0xff]
  %v433 = vld [vmem:[%s1 + $0xcd8] sm:$0xff]
  %v434 = vld [vmem:[%s1 + $0xce0] sm:$0xff]
  %v435 = vld [vmem:[%s1 + $0xce8] sm:$0xff]
  %v436 = vld [vmem:[%s1 + $0xcf0] sm:$0xff]
  %v437 = vld [vmem:[%s1 + $0xcf8] sm:$0xff]
  %v438 = vld [vmem:[%s1 + $0xd00] sm:$0xff]
  %v439 = vld [vmem:[%s1 + $0xd08] sm:$0xff]
  %v440 = vld [vmem:[%s1 + $0xd10] sm:$0xff]
  %v441 = vld [vmem:[%s1 + $0xd18] sm:$0xff]
  %v442 = vld [vmem:[%s1 + $0xd20] sm:$0xff]
  %v443 = vld [vmem:[%s1 + $0xd28] sm:$0xff]
  %v444 = vld [vmem:[%s1 + $0xd30] sm:$0xff]
  %v445 = vld [vmem:[%s1 + $0xd38] sm:$0xff]
  %v446 = vld [vmem:[%s1 + $0xd40] sm:$0xff]
  %v447 = vld [vmem:[%s1 + $0xd48] sm:$0xff]
  %v448 = vld [vmem:[%s1 + $0xd50] sm:$0xff]
  %v449 = vld [vmem:[%s1 + $0xd58] sm:$0xff]
  %v450 = vld [vmem:[%s1 + $0xd60] sm:$0xff]
  %v451 = vld [vmem:[%s1 + $0xd68] sm:$0xff]
  %v452 = vld [vmem:[%s1 + $0xd70] sm:$0xff]
  %v453 = vld [vmem:[%s1 + $0xd78] sm:$0xff]
  %v454 = vld [vmem:[%s1 + $0xd80] sm:$0xff]
  %v455 = vld [vmem:[%s1 + $0xd88] sm:$0xff]
  %v456 = vld [vmem:[%s1 + $0xd90] sm:$0xff]
  %v457 = vld [vmem:[%s1 + $0xd98] sm:$0xff]
  %v458 = vld [vmem:[%s1 + $0xda0] sm:$0xff]
  %v459 = vld [vmem:[%s1 + $0xda8] sm:$0xff]
  %v460 = vld [vmem:[%s1 + $0xdb0] sm:$0xff]
  %v461 = vld [vmem:[%s1 + $0xdb8] sm:$0xff]
  %v462 = vld [vmem:[%s1 + $0xdc0] sm:$0xff]
  %v463 = vld [vmem:[%s1 + $0xdc8] sm:$0xff]
  %v464 = vld [vmem:[%s1 + $0xdd0] sm:$0xff]
  %v465 = vld [vmem:[%s1 + $0xdd8] sm:$0xff]
  %v466 = vld [vmem:[%s1 + $0xde0] sm:$0xff]
  %v467 = vld [vmem:[%s1 + $0xde8] sm:$0xff]
  %v468 = vld [vmem:[%s1 + $0xdf0] sm:$0xff]
  %v469 = vld [vmem:[%s1 + $0xdf8] sm:$0xff]
  %v470 = vld [vmem:[%s1 + $0xe00] sm:$0xff]
  %v471 = vld [vmem:[%s1 + $0xe08] sm:$0xff]
  %v472 = vld [vmem:[%s1 + $0xe10] sm:$0xff]
  %v473 = vld [vmem:[%s1 + $0xe18] sm:$0xff]
  %v474 = vld [vmem:[%s1 + $0xe20] sm:$0xff]
  %v475 = vld [vmem:[%s1 + $0xe28] sm:$0xff]
  %v476 = vld [vmem:[%s1 + $0xe30] sm:$0xff]
  %v477 = vld [vmem:[%s1 + $0xe38] sm:$0xff]
  %v478 = vld [vmem:[%s1 + $0xe40] sm:$0xff]
  %v479 = vld [vmem:[%s1 + $0xe48] sm:$0xff]
  %v480 = vld [vmem:[%s1 + $0xe50] sm:$0xff]
  %v481 = vld [vmem:[%s1 + $0xe58] sm:$0xff]
  %v482 = vld [vmem:[%s1 + $0xe60] sm:$0xff]
  %v483 = vld [vmem:[%s1 + $0xe68] sm:$0xff]
  %v484 = vld [vmem:[%s1 + $0xe70] sm:$0xff]
  %v485 = vld [vmem:[%s1 + $0xe78] sm:$0xff]
  %v486 = vld [vmem:[%s1 + $0xe80] sm:$0xff]
  %v487 = vld [vmem:[%s1 + $0xe88] sm:$0xff]
  %v488 = vld [vmem:[%s1 + $0xe90] sm:$0xff]
  %v489 = vld [vmem:[%s1 + $0xe98] sm:$0xff]
  %v490 = vld [vmem:[%s1 + $0xea0] sm:$0xff]
  %v491 = vld [vmem:[%s1 + $0xea8] sm:$0xff]
  %v492 = vld [vmem:[%s1 + $0xeb0] sm:$0xff]
  %v493 = vld [vmem:[%s1 + $0xeb8] sm:$0xff]
  %v494 = vld [vmem:[%s1 + $0xec0] sm:$0xff]
  %v495 = vld [vmem:[%s1 + $0xec8] sm:$0xff]
  %v496 = vld [vmem:[%s1 + $0xed0] sm:$0xff]
  %v497 = vld [vmem:[%s1 + $0xed8] sm:$0xff]
  %v498 = vld [vmem:[%s1 + $0xee0] sm:$0xff]
  %v499 = vld [vmem:[%s1 + $0xee8] sm:$0xff]
  %v500 = vld [vmem:[%s1 + $0xef0] sm:$0xff]
  %v501 = vld [vmem:[%s1 + $0xef8] sm:$0xff]
  %v502 = vld [vmem:[%s1 + $0xf00] sm:$0xff]
  %v503 = vld [vmem:[%s1 + $0xf08] sm:$0xff]
  %v504 = vld [vmem:[%s1 + $0xf10] sm:$0xff]
  %v505 = vld [vmem:[%s1 + $0xf18] sm:$0xff]
  %v506 = vld [vmem:[%s1 + $0xf20] sm:$0xff]
  %v507 = vld [vmem:[%s1 + $0xf28] sm:$0xff]
  %v508 = vld [vmem:[%s1 + $0xf30] sm:$0xff]
  %v509 = vld [vmem:[%s1 + $0xf38] sm:$0xff]
  %v510 = vld [vmem:[%s1 + $0xf40] sm:$0xff]
  %v511 = vld [vmem:[%s1 + $0xf48] sm:$0xff]
  %v512 = vld [vmem:[%s1 + $0xf50] sm:$0xff]
  %v513 = vld [vmem:[%s1 + $0xf58] sm:$0xff]
  %v514 = vld [vmem:[%s1 + $0xf60] sm:$0xff]
  %v515 = vld [vmem:[%s1 + $0xf68] sm:$0xff]
  %v516 = vld [vmem:[%s1 + $0xf70] sm:$0xff]
  %v517 = vld [vmem:[%s1 + $0xf78] sm:$0xff]
  %v518 = vld [vmem:[%s1 + $0xf80] sm:$0xff]
  %v519 = vld [vmem:[%s1 + $0xf88] sm:$0xff]
  %v520 = vld [vmem:[%s1 + $0xf90] sm:$0xff]
  %v521 = vld [vmem:[%s1 + $0xf98] sm:$0xff]
  %v522 = vld [vmem:[%s1 + $0xfa0] sm:$0xff]
  %v523 = vld [vmem:[%s1 + $0xfa8] sm:$0xff]
  %v524 = vld [vmem:[%s1 + $0xfb0] sm:$0xff]
  %v525 = vld [vmem:[%s1 + $0xfb8] sm:$0xff]
  %v526 = vld [vmem:[%s1 + $0xfc0] sm:$0xff]
  %v527 = vld [vmem:[%s1 + $0xfc8] sm:$0xff]
  %v528 = vld [vmem:[%s1 + $0xfd0] sm:$0xff]
  %v529 = vld [vmem:[%s1 + $0xfd8] sm:$0xff]
  %v530 = vld [vmem:[%s1 + $0xfe0] sm:$0xff]
  %v531 = vld [vmem:[%s1 + $0xfe8] sm:$0xff]
  %v532 = vld [vmem:[%s1 + $0xff0] sm:$0xff]
  %v533 = vld [vmem:[%s1 + $0xff8] sm:$0xff]
  %v534 = vld [vmem:[%s2] sm:$0xff]
  %v536 = vlaneseq
  %v537 = vshrl.u32 %v536, 7
  %v538 = vsub.s32 0, %v537
  %v539 = vrot.slane %v534, %v538
  %v540 = vlaneseq
  %v541 = vshrl.u32 %v540, 7
  %v542 = vsub.s32 1, %v541
  %v543 = vrot.slane %v534, %v542
  %v544 = vlaneseq
  %v545 = vshrl.u32 %v544, 7
  %v546 = vsub.s32 2, %v545
  %v547 = vrot.slane %v534, %v546
  %v548 = vlaneseq
  %v549 = vshrl.u32 %v548, 7
  %v550 = vsub.s32 3, %v549
  %v551 = vrot.slane %v534, %v550
  %v552 = vlaneseq
  %v553 = vshrl.u32 %v552, 7
  %v554 = vsub.s32 4, %v553
  %v555 = vrot.slane %v534, %v554
  %v556 = vlaneseq
  %v557 = vshrl.u32 %v556, 7
  %v558 = vsub.s32 5, %v557
  %v559 = vrot.slane %v534, %v558
  %v560 = vlaneseq
  %v561 = vshrl.u32 %v560, 7
  %v562 = vsub.s32 6, %v561
  %v563 = vrot.slane %v534, %v562
  %v564 = vlaneseq
  %v565 = vshrl.u32 %v564, 7
  %v566 = vsub.s32 7, %v565
  %v567 = vrot.slane %v534, %v566
  %v578 = vcombine.high %v20, %v20
  %v579 = vcombine.high %v21, %v21
  %582 = vmatprep.subr.mxu0 %v143
  %583 = vmatpush1.msra.mxu0 %v142
  %584 = vmatprep.subr.mxu0 %v135
  %585 = vmatpush1.msra.mxu0 %v134
  %586 = vmatprep.subr.mxu0 %v127
  %587 = vmatpush1.msra.mxu0 %v126
  %588 = vmatprep.subr.mxu0 %v119
  %589 = vmatpush1.msra.mxu0 %v118
  %590 = vmatprep.subr.mxu0 %v111
  %591 = vmatpush1.msra.mxu0 %v110
  %592 = vmatprep.subr.mxu0 %v103
  %593 = vmatpush1.msra.mxu0 %v102
  %594 = vmatprep.subr.mxu0 %v95
  %595 = vmatpush1.msra.mxu0 %v94
  %596 = vmatprep.subr.mxu0 %v87
  %597 = vmatpush1.msra.mxu0 %v86
  %598 = vmatprep.subr.mxu0 %v79
  %599 = vmatpush1.msra.mxu0 %v78
  %600 = vmatprep.subr.mxu0 %v71
  %601 = vmatpush1.msra.mxu0 %v70
  %602 = vmatprep.subr.mxu0 %v63
  %603 = vmatpush1.msra.mxu0 %v62
  %604 = vmatprep.subr.mxu0 %v55
  %605 = vmatpush1.msra.mxu0 %v54
  %606 = vmatprep.subr.mxu0 %v47
  %607 = vmatpush1.msra.mxu0 %v46
  %608 = vmatprep.subr.mxu0 %v39
  %609 = vmatpush1.msra.mxu0 %v38
  %610 = vmatprep.subr.mxu0 %v31
  %611 = vmatpush1.msra.mxu0 %v30
  %612 = vmatprep.subr.mxu0 %v23
  %613 = vmatpush1.msra.mxu0 %v22
  %614 = vmatprep.subr.mxu0 %v271
  %615 = vmatpush2.msra.mxu0 %v270
  %616 = vmatprep.subr.mxu0 %v263
  %617 = vmatpush2.msra.mxu0 %v262
  %618 = vmatprep.subr.mxu0 %v255
  %619 = vmatpush2.msra.mxu0 %v254
  %620 = vmatprep.subr.mxu0 %v247
  %621 = vmatpush2.msra.mxu0 %v246
  %622 = vmatprep.subr.mxu0 %v239
  %623 = vmatpush2.msra.mxu0 %v238
  %624 = vmatprep.subr.mxu0 %v231
  %625 = vmatpush2.msra.mxu0 %v230
  %626 = vmatprep.subr.mxu0 %v223
  %627 = vmatpush2.msra.mxu0 %v222
  %628 = vmatprep.subr.mxu0 %v215
  %629 = vmatpush2.msra.mxu0 %v214
  %630 = vmatprep.subr.mxu0 %v207
  %631 = vmatpush2.msra.mxu0 %v206
  %632 = vmatprep.subr.mxu0 %v199
  %633 = vmatpush2.msra.mxu0 %v198
  %634 = vmatprep.subr.mxu0 %v191
  %635 = vmatpush2.msra.mxu0 %v190
  %636 = vmatprep.subr.mxu0 %v183
  %637 = vmatpush2.msra.mxu0 %v182
  %638 = vmatprep.subr.mxu0 %v175
  %639 = vmatpush2.msra.mxu0 %v174
  %640 = vmatprep.subr.mxu0 %v167
  %641 = vmatpush2.msra.mxu0 %v166
  %642 = vmatprep.subr.mxu0 %v159
  %643 = vmatpush2.msra.mxu0 %v158
  %644 = vmatprep.subr.mxu0 %v151
  %645 = vmatpush2.msra.mxu0 %v150
  %646 = vmatprep.mubr.f32.mxu0 %v578
  %647 = vmatmul.mubr.f32.gmra.mxu0 %v20
  %v648 = vpop.f32.mrf.mxu0
  %v649 = vadd.f32 %v539, %v648
  %v650 = vpop.f32.mrf.mxu0
  %v651 = vadd.f32 %v543, %v650
  %652 = vdwg.mxu0
  %653 = vmatprep.subr.mxu0 %v399
  %654 = vmatpush1.msra.mxu0 %v398
  %655 = vmatprep.subr.mxu0 %v391
  %656 = vmatpush1.msra.mxu0 %v390
  %657 = vmatprep.subr.mxu0 %v383
  %658 = vmatpush1.msra.mxu0 %v382
  %659 = vmatprep.subr.mxu0 %v375
  %660 = vmatpush1.msra.mxu0 %v374
  %661 = vmatprep.subr.mxu0 %v367
  %662 = vmatpush1.msra.mxu0 %v366
  %663 = vmatprep.subr.mxu0 %v359
  %664 = vmatpush1.msra.mxu0 %v358
  %665 = vmatprep.subr.mxu0 %v351
  %666 = vmatpush1.msra.mxu0 %v350
  %667 = vmatprep.subr.mxu0 %v343
  %668 = vmatpush1.msra.mxu0 %v342
  %669 = vmatprep.subr.mxu0 %v335
  %670 = vmatpush1.msra.mxu0 %v334
  %671 = vmatprep.subr.mxu0 %v327
  %672 = vmatpush1.msra.mxu0 %v326
  %673 = vmatprep.subr.mxu0 %v319
  %674 = vmatpush1.msra.mxu0 %v318
  %675 = vmatprep.subr.mxu0 %v311
  %676 = vmatpush1.msra.mxu0 %v310
  %677 = vmatprep.subr.mxu0 %v303
  %678 = vmatpush1.msra.mxu0 %v302
  %679 = vmatprep.subr.mxu0 %v295
  %680 = vmatpush1.msra.mxu0 %v294
  %681 = vmatprep.subr.mxu0 %v287
  %682 = vmatpush1.msra.mxu0 %v286
  %683 = vmatprep.subr.mxu0 %v279
  %684 = vmatpush1.msra.mxu0 %v278
  %685 = vmatprep.subr.mxu0 %v527
  %686 = vmatpush2.msra.mxu0 %v526
  %687 = vmatprep.subr.mxu0 %v519
  %688 = vmatpush2.msra.mxu0 %v518
  %689 = vmatprep.subr.mxu0 %v511
  %690 = vmatpush2.msra.mxu0 %v510
  %691 = vmatprep.subr.mxu0 %v503
  %692 = vmatpush2.msra.mxu0 %v502
  %693 = vmatprep.subr.mxu0 %v495
  %694 = vmatpush2.msra.mxu0 %v494
  %695 = vmatprep.subr.mxu0 %v487
  %696 = vmatpush2.msra.mxu0 %v486
  %697 = vmatprep.subr.mxu0 %v479
  %698 = vmatpush2.msra.mxu0 %v478
  %699 = vmatprep.subr.mxu0 %v471
  %700 = vmatpush2.msra.mxu0 %v470
  %701 = vmatprep.subr.mxu0 %v463
  %702 = vmatpush2.msra.mxu0 %v462
  %703 = vmatprep.subr.mxu0 %v455
  %704 = vmatpush2.msra.mxu0 %v454
  %705 = vmatprep.subr.mxu0 %v447
  %706 = vmatpush2.msra.mxu0 %v446
  %707 = vmatprep.subr.mxu0 %v439
  %708 = vmatpush2.msra.mxu0 %v438
  %709 = vmatprep.subr.mxu0 %v431
  %710 = vmatpush2.msra.mxu0 %v430
  %711 = vmatprep.subr.mxu0 %v423
  %712 = vmatpush2.msra.mxu0 %v422
  %713 = vmatprep.subr.mxu0 %v415
  %714 = vmatpush2.msra.mxu0 %v414
  %715 = vmatprep.subr.mxu0 %v407
  %716 = vmatpush2.msra.mxu0 %v406
  %717 = vmatprep.mubr.f32.mxu0 %v579
  %718 = vmatmul.mubr.f32.gmra.mxu0 %v21
  %v719 = vpop.f32.mrf.mxu0
  %v720 = vadd.f32 %v649, %v719
  %v721 = vpop.f32.mrf.mxu0
  %v722 = vadd.f32 %v651, %v721
  %723 = vdwg.mxu0
  %724 = vmatprep.subr.mxu0 %v145
  %725 = vmatpush1.msra.mxu0 %v144
  %726 = vmatprep.subr.mxu0 %v137
  %727 = vmatpush1.msra.mxu0 %v136
  %728 = vmatprep.subr.mxu0 %v129
  %729 = vmatpush1.msra.mxu0 %v128
  %730 = vmatprep.subr.mxu0 %v121
  %731 = vmatpush1.msra.mxu0 %v120
  %732 = vmatprep.subr.mxu0 %v113
  %733 = vmatpush1.msra.mxu0 %v112
  %734 = vmatprep.subr.mxu0 %v105
  %735 = vmatpush1.msra.mxu0 %v104
  %736 = vmatprep.subr.mxu0 %v97
  %737 = vmatpush1.msra.mxu0 %v96
  %738 = vmatprep.subr.mxu0 %v89
  %739 = vmatpush1.msra.mxu0 %v88
  %740 = vmatprep.subr.mxu0 %v81
  %741 = vmatpush1.msra.mxu0 %v80
  %742 = vmatprep.subr.mxu0 %v73
  %743 = vmatpush1.msra.mxu0 %v72
  %744 = vmatprep.subr.mxu0 %v65
  %745 = vmatpush1.msra.mxu0 %v64
  %746 = vmatprep.subr.mxu0 %v57
  %747 = vmatpush1.msra.mxu0 %v56
  %748 = vmatprep.subr.mxu0 %v49
  %749 = vmatpush1.msra.mxu0 %v48
  %750 = vmatprep.subr.mxu0 %v41
  %751 = vmatpush1.msra.mxu0 %v40
  %752 = vmatprep.subr.mxu0 %v33
  %753 = vmatpush1.msra.mxu0 %v32
  %754 = vmatprep.subr.mxu0 %v25
  %755 = vmatpush1.msra.mxu0 %v24
  %756 = vmatprep.subr.mxu0 %v273
  %757 = vmatpush2.msra.mxu0 %v272
  %758 = vmatprep.subr.mxu0 %v265
  %759 = vmatpush2.msra.mxu0 %v264
  %760 = vmatprep.subr.mxu0 %v257
  %761 = vmatpush2.msra.mxu0 %v256
  %762 = vmatprep.subr.mxu0 %v249
  %763 = vmatpush2.msra.mxu0 %v248
  %764 = vmatprep.subr.mxu0 %v241
  %765 = vmatpush2.msra.mxu0 %v240
  %766 = vmatprep.subr.mxu0 %v233
  %767 = vmatpush2.msra.mxu0 %v232
  %768 = vmatprep.subr.mxu0 %v225
  %769 = vmatpush2.msra.mxu0 %v224
  %770 = vmatprep.subr.mxu0 %v217
  %771 = vmatpush2.msra.mxu0 %v216
  %772 = vmatprep.subr.mxu0 %v209
  %773 = vmatpush2.msra.mxu0 %v208
  %774 = vmatprep.subr.mxu0 %v201
  %775 = vmatpush2.msra.mxu0 %v200
  %776 = vmatprep.subr.mxu0 %v193
  %777 = vmatpush2.msra.mxu0 %v192
  %778 = vmatprep.subr.mxu0 %v185
  %779 = vmatpush2.msra.mxu0 %v184
  %780 = vmatprep.subr.mxu0 %v177
  %781 = vmatpush2.msra.mxu0 %v176
  %782 = vmatprep.subr.mxu0 %v169
  %783 = vmatpush2.msra.mxu0 %v168
  %784 = vmatprep.subr.mxu0 %v161
  %785 = vmatpush2.msra.mxu0 %v160
  %786 = vmatprep.subr.mxu0 %v153
  %787 = vmatpush2.msra.mxu0 %v152
  %788 = vmatprep.mubr.f32.mxu0 %v578
  %789 = vmatmul.mubr.f32.gmra.mxu0 %v20
  %v790 = vpop.f32.mrf.mxu0
  %v791 = vadd.f32 %v547, %v790
  %v792 = vpop.f32.mrf.mxu0
  %v793 = vadd.f32 %v551, %v792
  %794 = vdwg.mxu0
  %795 = vmatprep.subr.mxu0 %v401
  %796 = vmatpush1.msra.mxu0 %v400
  %797 = vmatprep.subr.mxu0 %v393
  %798 = vmatpush1.msra.mxu0 %v392
  %799 = vmatprep.subr.mxu0 %v385
  %800 = vmatpush1.msra.mxu0 %v384
  %801 = vmatprep.subr.mxu0 %v377
  %802 = vmatpush1.msra.mxu0 %v376
  %803 = vmatprep.subr.mxu0 %v369
  %804 = vmatpush1.msra.mxu0 %v368
  %805 = vmatprep.subr.mxu0 %v361
  %806 = vmatpush1.msra.mxu0 %v360
  %807 = vmatprep.subr.mxu0 %v353
  %808 = vmatpush1.msra.mxu0 %v352
  %809 = vmatprep.subr.mxu0 %v345
  %810 = vmatpush1.msra.mxu0 %v344
  %811 = vmatprep.subr.mxu0 %v337
  %812 = vmatpush1.msra.mxu0 %v336
  %813 = vmatprep.subr.mxu0 %v329
  %814 = vmatpush1.msra.mxu0 %v328
  %815 = vmatprep.subr.mxu0 %v321
  %816 = vmatpush1.msra.mxu0 %v320
  %817 = vmatprep.subr.mxu0 %v313
  %818 = vmatpush1.msra.mxu0 %v312
  %819 = vmatprep.subr.mxu0 %v305
  %820 = vmatpush1.msra.mxu0 %v304
  %821 = vmatprep.subr.mxu0 %v297
  %822 = vmatpush1.msra.mxu0 %v296
  %823 = vmatprep.subr.mxu0 %v289
  %824 = vmatpush1.msra.mxu0 %v288
  %825 = vmatprep.subr.mxu0 %v281
  %826 = vmatpush1.msra.mxu0 %v280
  %827 = vmatprep.subr.mxu0 %v529
  %828 = vmatpush2.msra.mxu0 %v528
  %829 = vmatprep.subr.mxu0 %v521
  %830 = vmatpush2.msra.mxu0 %v520
  %831 = vmatprep.subr.mxu0 %v513
  %832 = vmatpush2.msra.mxu0 %v512
  %833 = vmatprep.subr.mxu0 %v505
  %834 = vmatpush2.msra.mxu0 %v504
  %835 = vmatprep.subr.mxu0 %v497
  %836 = vmatpush2.msra.mxu0 %v496
  %837 = vmatprep.subr.mxu0 %v489
  %838 = vmatpush2.msra.mxu0 %v488
  %839 = vmatprep.subr.mxu0 %v481
  %840 = vmatpush2.msra.mxu0 %v480
  %841 = vmatprep.subr.mxu0 %v473
  %842 = vmatpush2.msra.mxu0 %v472
  %843 = vmatprep.subr.mxu0 %v465
  %844 = vmatpush2.msra.mxu0 %v464
  %845 = vmatprep.subr.mxu0 %v457
  %846 = vmatpush2.msra.mxu0 %v456
  %847 = vmatprep.subr.mxu0 %v449
  %848 = vmatpush2.msra.mxu0 %v448
  %849 = vmatprep.subr.mxu0 %v441
  %850 = vmatpush2.msra.mxu0 %v440
  %851 = vmatprep.subr.mxu0 %v433
  %852 = vmatpush2.msra.mxu0 %v432
  %853 = vmatprep.subr.mxu0 %v425
  %854 = vmatpush2.msra.mxu0 %v424
  %855 = vmatprep.subr.mxu0 %v417
  %856 = vmatpush2.msra.mxu0 %v416
  %857 = vmatprep.subr.mxu0 %v409
  %858 = vmatpush2.msra.mxu0 %v408
  %859 = vmatprep.mubr.f32.mxu0 %v579
  %860 = vmatmul.mubr.f32.gmra.mxu0 %v21
  %v861 = vpop.f32.mrf.mxu0
  %v862 = vadd.f32 %v791, %v861
  %v863 = vpop.f32.mrf.mxu0
  %v864 = vadd.f32 %v793, %v863
  %865 = vdwg.mxu0
  %866 = vmatprep.subr.mxu0 %v147
  %867 = vmatpush1.msra.mxu0 %v146
  %868 = vmatprep.subr.mxu0 %v139
  %869 = vmatpush1.msra.mxu0 %v138
  %870 = vmatprep.subr.mxu0 %v131
  %871 = vmatpush1.msra.mxu0 %v130
  %872 = vmatprep.subr.mxu0 %v123
  %873 = vmatpush1.msra.mxu0 %v122
  %874 = vmatprep.subr.mxu0 %v115
  %875 = vmatpush1.msra.mxu0 %v114
  %876 = vmatprep.subr.mxu0 %v107
  %877 = vmatpush1.msra.mxu0 %v106
  %878 = vmatprep.subr.mxu0 %v99
  %879 = vmatpush1.msra.mxu0 %v98
  %880 = vmatprep.subr.mxu0 %v91
  %881 = vmatpush1.msra.mxu0 %v90
  %882 = vmatprep.subr.mxu0 %v83
  %883 = vmatpush1.msra.mxu0 %v82
  %884 = vmatprep.subr.mxu0 %v75
  %885 = vmatpush1.msra.mxu0 %v74
  %886 = vmatprep.subr.mxu0 %v67
  %887 = vmatpush1.msra.mxu0 %v66
  %888 = vmatprep.subr.mxu0 %v59
  %889 = vmatpush1.msra.mxu0 %v58
  %890 = vmatprep.subr.mxu0 %v51
  %891 = vmatpush1.msra.mxu0 %v50
  %892 = vmatprep.subr.mxu0 %v43
  %893 = vmatpush1.msra.mxu0 %v42
  %894 = vmatprep.subr.mxu0 %v35
  %895 = vmatpush1.msra.mxu0 %v34
  %896 = vmatprep.subr.mxu0 %v27
  %897 = vmatpush1.msra.mxu0 %v26
  %898 = vmatprep.subr.mxu0 %v275
  %899 = vmatpush2.msra.mxu0 %v274
  %900 = vmatprep.subr.mxu0 %v267
  %901 = vmatpush2.msra.mxu0 %v266
  %902 = vmatprep.subr.mxu0 %v259
  %903 = vmatpush2.msra.mxu0 %v258
  %904 = vmatprep.subr.mxu0 %v251
  %905 = vmatpush2.msra.mxu0 %v250
  %906 = vmatprep.subr.mxu0 %v243
  %907 = vmatpush2.msra.mxu0 %v242
  %908 = vmatprep.subr.mxu0 %v235
  %909 = vmatpush2.msra.mxu0 %v234
  %910 = vmatprep.subr.mxu0 %v227
  %911 = vmatpush2.msra.mxu0 %v226
  %912 = vmatprep.subr.mxu0 %v219
  %913 = vmatpush2.msra.mxu0 %v218
  %914 = vmatprep.subr.mxu0 %v211
  %915 = vmatpush2.msra.mxu0 %v210
  %916 = vmatprep.subr.mxu0 %v203
  %917 = vmatpush2.msra.mxu0 %v202
  %918 = vmatprep.subr.mxu0 %v195
  %919 = vmatpush2.msra.mxu0 %v194
  %920 = vmatprep.subr.mxu0 %v187
  %921 = vmatpush2.msra.mxu0 %v186
  %922 = vmatprep.subr.mxu0 %v179
  %923 = vmatpush2.msra.mxu0 %v178
  %924 = vmatprep.subr.mxu0 %v171
  %925 = vmatpush2.msra.mxu0 %v170
  %926 = vmatprep.subr.mxu0 %v163
  %927 = vmatpush2.msra.mxu0 %v162
  %928 = vmatprep.subr.mxu0 %v155
  %929 = vmatpush2.msra.mxu0 %v154
  %930 = vmatprep.mubr.f32.mxu0 %v578
  %931 = vmatmul.mubr.f32.gmra.mxu0 %v20
  %v932 = vpop.f32.mrf.mxu0
  %v933 = vadd.f32 %v555, %v932
  %v934 = vpop.f32.mrf.mxu0
  %v935 = vadd.f32 %v559, %v934
  %936 = vdwg.mxu0
  %937 = vmatprep.subr.mxu0 %v403
  %938 = vmatpush1.msra.mxu0 %v402
  %939 = vmatprep.subr.mxu0 %v395
  %940 = vmatpush1.msra.mxu0 %v394
  %941 = vmatprep.subr.mxu0 %v387
  %942 = vmatpush1.msra.mxu0 %v386
  %943 = vmatprep.subr.mxu0 %v379
  %944 = vmatpush1.msra.mxu0 %v378
  %945 = vmatprep.subr.mxu0 %v371
  %946 = vmatpush1.msra.mxu0 %v370
  %947 = vmatprep.subr.mxu0 %v363
  %948 = vmatpush1.msra.mxu0 %v362
  %949 = vmatprep.subr.mxu0 %v355
  %950 = vmatpush1.msra.mxu0 %v354
  %951 = vmatprep.subr.mxu0 %v347
  %952 = vmatpush1.msra.mxu0 %v346
  %953 = vmatprep.subr.mxu0 %v339
  %954 = vmatpush1.msra.mxu0 %v338
  %955 = vmatprep.subr.mxu0 %v331
  %956 = vmatpush1.msra.mxu0 %v330
  %957 = vmatprep.subr.mxu0 %v323
  %958 = vmatpush1.msra.mxu0 %v322
  %959 = vmatprep.subr.mxu0 %v315
  %960 = vmatpush1.msra.mxu0 %v314
  %961 = vmatprep.subr.mxu0 %v307
  %962 = vmatpush1.msra.mxu0 %v306
  %963 = vmatprep.subr.mxu0 %v299
  %964 = vmatpush1.msra.mxu0 %v298
  %965 = vmatprep.subr.mxu0 %v291
  %966 = vmatpush1.msra.mxu0 %v290
  %967 = vmatprep.subr.mxu0 %v283
  %968 = vmatpush1.msra.mxu0 %v282
  %969 = vmatprep.subr.mxu0 %v531
  %970 = vmatpush2.msra.mxu0 %v530
  %971 = vmatprep.subr.mxu0 %v523
  %972 = vmatpush2.msra.mxu0 %v522
  %973 = vmatprep.subr.mxu0 %v515
  %974 = vmatpush2.msra.mxu0 %v514
  %975 = vmatprep.subr.mxu0 %v507
  %976 = vmatpush2.msra.mxu0 %v506
  %977 = vmatprep.subr.mxu0 %v499
  %978 = vmatpush2.msra.mxu0 %v498
  %979 = vmatprep.subr.mxu0 %v491
  %980 = vmatpush2.msra.mxu0 %v490
  %981 = vmatprep.subr.mxu0 %v483
  %982 = vmatpush2.msra.mxu0 %v482
  %983 = vmatprep.subr.mxu0 %v475
  %984 = vmatpush2.msra.mxu0 %v474
  %985 = vmatprep.subr.mxu0 %v467
  %986 = vmatpush2.msra.mxu0 %v466
  %987 = vmatprep.subr.mxu0 %v459
  %988 = vmatpush2.msra.mxu0 %v458
  %989 = vmatprep.subr.mxu0 %v451
  %990 = vmatpush2.msra.mxu0 %v450
  %991 = vmatprep.subr.mxu0 %v443
  %992 = vmatpush2.msra.mxu0 %v442
  %993 = vmatprep.subr.mxu0 %v435
  %994 = vmatpush2.msra.mxu0 %v434
  %995 = vmatprep.subr.mxu0 %v427
  %996 = vmatpush2.msra.mxu0 %v426
  %997 = vmatprep.subr.mxu0 %v419
  %998 = vmatpush2.msra.mxu0 %v418
  %999 = vmatprep.subr.mxu0 %v411
  %1000 = vmatpush2.msra.mxu0 %v410
  %1001 = vmatprep.mubr.f32.mxu0 %v579
  %1002 = vmatmul.mubr.f32.gmra.mxu0 %v21
  %v1003 = vpop.f32.mrf.mxu0
  %v1004 = vadd.f32 %v933, %v1003
  %v1005 = vpop.f32.mrf.mxu0
  %v1006 = vadd.f32 %v935, %v1005
  %1007 = vdwg.mxu0
  %1008 = vmatprep.subr.mxu0 %v149
  %1009 = vmatpush1.msra.mxu0 %v148
  %1010 = vmatprep.subr.mxu0 %v141
  %1011 = vmatpush1.msra.mxu0 %v140
  %1012 = vmatprep.subr.mxu0 %v133
  %1013 = vmatpush1.msra.mxu0 %v132
  %1014 = vmatprep.subr.mxu0 %v125
  %1015 = vmatpush1.msra.mxu0 %v124
  %1016 = vmatprep.subr.mxu0 %v117
  %1017 = vmatpush1.msra.mxu0 %v116
  %1018 = vmatprep.subr.mxu0 %v109
  %1019 = vmatpush1.msra.mxu0 %v108
  %1020 = vmatprep.subr.mxu0 %v101
  %1021 = vmatpush1.msra.mxu0 %v100
  %1022 = vmatprep.subr.mxu0 %v93
  %1023 = vmatpush1.msra.mxu0 %v92
  %1024 = vmatprep.subr.mxu0 %v85
  %1025 = vmatpush1.msra.mxu0 %v84
  %1026 = vmatprep.subr.mxu0 %v77
  %1027 = vmatpush1.msra.mxu0 %v76
  %1028 = vmatprep.subr.mxu0 %v69
  %1029 = vmatpush1.msra.mxu0 %v68
  %1030 = vmatprep.subr.mxu0 %v61
  %1031 = vmatpush1.msra.mxu0 %v60
  %1032 = vmatprep.subr.mxu0 %v53
  %1033 = vmatpush1.msra.mxu0 %v52
  %1034 = vmatprep.subr.mxu0 %v45
  %1035 = vmatpush1.msra.mxu0 %v44
  %1036 = vmatprep.subr.mxu0 %v37
  %1037 = vmatpush1.msra.mxu0 %v36
  %1038 = vmatprep.subr.mxu0 %v29
  %1039 = vmatpush1.msra.mxu0 %v28
  %1040 = vmatprep.subr.mxu0 %v277
  %1041 = vmatpush2.msra.mxu0 %v276
  %1042 = vmatprep.subr.mxu0 %v269
  %1043 = vmatpush2.msra.mxu0 %v268
  %1044 = vmatprep.subr.mxu0 %v261
  %1045 = vmatpush2.msra.mxu0 %v260
  %1046 = vmatprep.subr.mxu0 %v253
  %1047 = vmatpush2.msra.mxu0 %v252
  %1048 = vmatprep.subr.mxu0 %v245
  %1049 = vmatpush2.msra.mxu0 %v244
  %1050 = vmatprep.subr.mxu0 %v237
  %1051 = vmatpush2.msra.mxu0 %v236
  %1052 = vmatprep.subr.mxu0 %v229
  %1053 = vmatpush2.msra.mxu0 %v228
  %1054 = vmatprep.subr.mxu0 %v221
  %1055 = vmatpush2.msra.mxu0 %v220
  %1056 = vmatprep.subr.mxu0 %v213
  %1057 = vmatpush2.msra.mxu0 %v212
  %1058 = vmatprep.subr.mxu0 %v205
  %1059 = vmatpush2.msra.mxu0 %v204
  %1060 = vmatprep.subr.mxu0 %v197
  %1061 = vmatpush2.msra.mxu0 %v196
  %1062 = vmatprep.subr.mxu0 %v189
  %1063 = vmatpush2.msra.mxu0 %v188
  %1064 = vmatprep.subr.mxu0 %v181
  %1065 = vmatpush2.msra.mxu0 %v180
  %1066 = vmatprep.subr.mxu0 %v173
  %1067 = vmatpush2.msra.mxu0 %v172
  %1068 = vmatprep.subr.mxu0 %v165
  %1069 = vmatpush2.msra.mxu0 %v164
  %1070 = vmatprep.subr.mxu0 %v157
  %1071 = vmatpush2.msra.mxu0 %v156
  %1072 = vmatprep.mubr.f32.mxu0 %v578
  %1073 = vmatmul.mubr.f32.gmra.mxu0 %v20
  %v1074 = vpop.f32.mrf.mxu0
  %v1075 = vadd.f32 %v563, %v1074
  %v1076 = vpop.f32.mrf.mxu0
  %v1077 = vadd.f32 %v567, %v1076
  %1078 = vdwg.mxu0
  %1079 = vmatprep.subr.mxu0 %v405
  %1080 = vmatpush1.msra.mxu0 %v404
  %1081 = vmatprep.subr.mxu0 %v397
  %1082 = vmatpush1.msra.mxu0 %v396
  %1083 = vmatprep.subr.mxu0 %v389
  %1084 = vmatpush1.msra.mxu0 %v388
  %1085 = vmatprep.subr.mxu0 %v381
  %1086 = vmatpush1.msra.mxu0 %v380
  %1087 = vmatprep.subr.mxu0 %v373
  %1088 = vmatpush1.msra.mxu0 %v372
  %1089 = vmatprep.subr.mxu0 %v365
  %1090 = vmatpush1.msra.mxu0 %v364
  %1091 = vmatprep.subr.mxu0 %v357
  %1092 = vmatpush1.msra.mxu0 %v356
  %1093 = vmatprep.subr.mxu0 %v349
  %1094 = vmatpush1.msra.mxu0 %v348
  %1095 = vmatprep.subr.mxu0 %v341
  %1096 = vmatpush1.msra.mxu0 %v340
  %1097 = vmatprep.subr.mxu0 %v333
  %1098 = vmatpush1.msra.mxu0 %v332
  %1099 = vmatprep.subr.mxu0 %v325
  %1100 = vmatpush1.msra.mxu0 %v324
  %1101 = vmatprep.subr.mxu0 %v317
  %1102 = vmatpush1.msra.mxu0 %v316
  %1103 = vmatprep.subr.mxu0 %v309
  %1104 = vmatpush1.msra.mxu0 %v308
  %1105 = vmatprep.subr.mxu0 %v301
  %1106 = vmatpush1.msra.mxu0 %v300
  %1107 = vmatprep.subr.mxu0 %v293
  %1108 = vmatpush1.msra.mxu0 %v292
  %1109 = vmatprep.subr.mxu0 %v285
  %1110 = vmatpush1.msra.mxu0 %v284
  %1111 = vmatprep.subr.mxu0 %v533
  %1112 = vmatpush2.msra.mxu0 %v532
  %1113 = vmatprep.subr.mxu0 %v525
  %1114 = vmatpush2.msra.mxu0 %v524
  %1115 = vmatprep.subr.mxu0 %v517
  %1116 = vmatpush2.msra.mxu0 %v516
  %1117 = vmatprep.subr.mxu0 %v509
  %1118 = vmatpush2.msra.mxu0 %v508
  %1119 = vmatprep.subr.mxu0 %v501
  %1120 = vmatpush2.msra.mxu0 %v500
  %1121 = vmatprep.subr.mxu0 %v493
  %1122 = vmatpush2.msra.mxu0 %v492
  %1123 = vmatprep.subr.mxu0 %v485
  %1124 = vmatpush2.msra.mxu0 %v484
  %1125 = vmatprep.subr.mxu0 %v477
  %1126 = vmatpush2.msra.mxu0 %v476
  %1127 = vmatprep.subr.mxu0 %v469
  %1128 = vmatpush2.msra.mxu0 %v468
  %1129 = vmatprep.subr.mxu0 %v461
  %1130 = vmatpush2.msra.mxu0 %v460
  %1131 = vmatprep.subr.mxu0 %v453
  %1132 = vmatpush2.msra.mxu0 %v452
  %1133 = vmatprep.subr.mxu0 %v445
  %1134 = vmatpush2.msra.mxu0 %v444
  %1135 = vmatprep.subr.mxu0 %v437
  %1136 = vmatpush2.msra.mxu0 %v436
  %1137 = vmatprep.subr.mxu0 %v429
  %1138 = vmatpush2.msra.mxu0 %v428
  %1139 = vmatprep.subr.mxu0 %v421
  %1140 = vmatpush2.msra.mxu0 %v420
  %1141 = vmatprep.subr.mxu0 %v413
  %1142 = vmatpush2.msra.mxu0 %v412
  %1143 = vmatprep.mubr.f32.mxu0 %v579
  %1144 = vmatmul.mubr.f32.gmra.mxu0 %v21
  %v1145 = vpop.f32.mrf.mxu0
  %v1146 = vadd.f32 %v1075, %v1145
  %v1147 = vpop.f32.mrf.mxu0
  %v1148 = vadd.f32 %v1077, %v1147
  %1149 = vdwg.mxu0
  %v1150 = vmax.f32 %v720, 0.0
  %v1151 = vmax.f32 %v722, 0.0
  %v1152 = vmax.f32 %v862, 0.0
  %v1153 = vmax.f32 %v864, 0.0
  %v1154 = vmax.f32 %v1004, 0.0
  %v1155 = vmax.f32 %v1006, 0.0
  %v1156 = vmax.f32 %v1146, 0.0
  %v1157 = vmax.f32 %v1148, 0.0
  %v1158 = vld [vmem:[%s3] sm:$0xff]
  %v1159 = vld [vmem:[%s3 + $0x8] sm:$0xff]
  %v1160 = vld [vmem:[%s3 + $0x10] sm:$0xff]
  %v1161 = vld [vmem:[%s3 + $0x18] sm:$0xff]
  %v1162 = vld [vmem:[%s3 + $0x20] sm:$0xff]
  %v1163 = vld [vmem:[%s3 + $0x28] sm:$0xff]
  %v1164 = vld [vmem:[%s3 + $0x30] sm:$0xff]
  %v1165 = vld [vmem:[%s3 + $0x38] sm:$0xff]
  %v1166 = vld [vmem:[%s3 + $0x40] sm:$0xff]
  %v1167 = vld [vmem:[%s3 + $0x48] sm:$0xff]
  %v1168 = vld [vmem:[%s3 + $0x50] sm:$0xff]
  %v1169 = vld [vmem:[%s3 + $0x58] sm:$0xff]
  %v1170 = vld [vmem:[%s3 + $0x60] sm:$0xff]
  %v1171 = vld [vmem:[%s3 + $0x68] sm:$0xff]
  %v1172 = vld [vmem:[%s3 + $0x70] sm:$0xff]
  %v1173 = vld [vmem:[%s3 + $0x78] sm:$0xff]
  %v1174 = vld [vmem:[%s3 + $0x80] sm:$0xff]
  %v1175 = vld [vmem:[%s3 + $0x88] sm:$0xff]
  %v1176 = vld [vmem:[%s3 + $0x90] sm:$0xff]
  %v1177 = vld [vmem:[%s3 + $0x98] sm:$0xff]
  %v1178 = vld [vmem:[%s3 + $0xa0] sm:$0xff]
  %v1179 = vld [vmem:[%s3 + $0xa8] sm:$0xff]
  %v1180 = vld [vmem:[%s3 + $0xb0] sm:$0xff]
  %v1181 = vld [vmem:[%s3 + $0xb8] sm:$0xff]
  %v1182 = vld [vmem:[%s3 + $0xc0] sm:$0xff]
  %v1183 = vld [vmem:[%s3 + $0xc8] sm:$0xff]
  %v1184 = vld [vmem:[%s3 + $0xd0] sm:$0xff]
  %v1185 = vld [vmem:[%s3 + $0xd8] sm:$0xff]
  %v1186 = vld [vmem:[%s3 + $0xe0] sm:$0xff]
  %v1187 = vld [vmem:[%s3 + $0xe8] sm:$0xff]
  %v1188 = vld [vmem:[%s3 + $0xf0] sm:$0xff]
  %v1189 = vld [vmem:[%s3 + $0xf8] sm:$0xff]
  %v1190 = vld [vmem:[%s3 + $0x100] sm:$0xff]
  %v1191 = vld [vmem:[%s3 + $0x108] sm:$0xff]
  %v1192 = vld [vmem:[%s3 + $0x110] sm:$0xff]
  %v1193 = vld [vmem:[%s3 + $0x118] sm:$0xff]
  %v1194 = vld [vmem:[%s3 + $0x120] sm:$0xff]
  %v1195 = vld [vmem:[%s3 + $0x128] sm:$0xff]
  %v1196 = vld [vmem:[%s3 + $0x130] sm:$0xff]
  %v1197 = vld [vmem:[%s3 + $0x138] sm:$0xff]
  %v1198 = vld [vmem:[%s3 + $0x140] sm:$0xff]
  %v1199 = vld [vmem:[%s3 + $0x148] sm:$0xff]
  %v1200 = vld [vmem:[%s3 + $0x150] sm:$0xff]
  %v1201 = vld [vmem:[%s3 + $0x158] sm:$0xff]
  %v1202 = vld [vmem:[%s3 + $0x160] sm:$0xff]
  %v1203 = vld [vmem:[%s3 + $0x168] sm:$0xff]
  %v1204 = vld [vmem:[%s3 + $0x170] sm:$0xff]
  %v1205 = vld [vmem:[%s3 + $0x178] sm:$0xff]
  %v1206 = vld [vmem:[%s3 + $0x180] sm:$0xff]
  %v1207 = vld [vmem:[%s3 + $0x188] sm:$0xff]
  %v1208 = vld [vmem:[%s3 + $0x190] sm:$0xff]
  %v1209 = vld [vmem:[%s3 + $0x198] sm:$0xff]
  %v1210 = vld [vmem:[%s3 + $0x1a0] sm:$0xff]
  %v1211 = vld [vmem:[%s3 + $0x1a8] sm:$0xff]
  %v1212 = vld [vmem:[%s3 + $0x1b0] sm:$0xff]
  %v1213 = vld [vmem:[%s3 + $0x1b8] sm:$0xff]
  %v1214 = vld [vmem:[%s3 + $0x1c0] sm:$0xff]
  %v1215 = vld [vmem:[%s3 + $0x1c8] sm:$0xff]
  %v1216 = vld [vmem:[%s3 + $0x1d0] sm:$0xff]
  %v1217 = vld [vmem:[%s3 + $0x1d8] sm:$0xff]
  %v1218 = vld [vmem:[%s3 + $0x1e0] sm:$0xff]
  %v1219 = vld [vmem:[%s3 + $0x1e8] sm:$0xff]
  %v1220 = vld [vmem:[%s3 + $0x1f0] sm:$0xff]
  %v1221 = vld [vmem:[%s3 + $0x1f8] sm:$0xff]
  %v1222 = vld [vmem:[%s3 + $0x200] sm:$0xff]
  %v1223 = vld [vmem:[%s3 + $0x208] sm:$0xff]
  %v1224 = vld [vmem:[%s3 + $0x210] sm:$0xff]
  %v1225 = vld [vmem:[%s3 + $0x218] sm:$0xff]
  %v1226 = vld [vmem:[%s3 + $0x220] sm:$0xff]
  %v1227 = vld [vmem:[%s3 + $0x228] sm:$0xff]
  %v1228 = vld [vmem:[%s3 + $0x230] sm:$0xff]
  %v1229 = vld [vmem:[%s3 + $0x238] sm:$0xff]
  %v1230 = vld [vmem:[%s3 + $0x240] sm:$0xff]
  %v1231 = vld [vmem:[%s3 + $0x248] sm:$0xff]
  %v1232 = vld [vmem:[%s3 + $0x250] sm:$0xff]
  %v1233 = vld [vmem:[%s3 + $0x258] sm:$0xff]
  %v1234 = vld [vmem:[%s3 + $0x260] sm:$0xff]
  %v1235 = vld [vmem:[%s3 + $0x268] sm:$0xff]
  %v1236 = vld [vmem:[%s3 + $0x270] sm:$0xff]
  %v1237 = vld [vmem:[%s3 + $0x278] sm:$0xff]
  %v1238 = vld [vmem:[%s3 + $0x280] sm:$0xff]
  %v1239 = vld [vmem:[%s3 + $0x288] sm:$0xff]
  %v1240 = vld [vmem:[%s3 + $0x290] sm:$0xff]
  %v1241 = vld [vmem:[%s3 + $0x298] sm:$0xff]
  %v1242 = vld [vmem:[%s3 + $0x2a0] sm:$0xff]
  %v1243 = vld [vmem:[%s3 + $0x2a8] sm:$0xff]
  %v1244 = vld [vmem:[%s3 + $0x2b0] sm:$0xff]
  %v1245 = vld [vmem:[%s3 + $0x2b8] sm:$0xff]
  %v1246 = vld [vmem:[%s3 + $0x2c0] sm:$0xff]
  %v1247 = vld [vmem:[%s3 + $0x2c8] sm:$0xff]
  %v1248 = vld [vmem:[%s3 + $0x2d0] sm:$0xff]
  %v1249 = vld [vmem:[%s3 + $0x2d8] sm:$0xff]
  %v1250 = vld [vmem:[%s3 + $0x2e0] sm:$0xff]
  %v1251 = vld [vmem:[%s3 + $0x2e8] sm:$0xff]
  %v1252 = vld [vmem:[%s3 + $0x2f0] sm:$0xff]
  %v1253 = vld [vmem:[%s3 + $0x2f8] sm:$0xff]
  %v1254 = vld [vmem:[%s3 + $0x300] sm:$0xff]
  %v1255 = vld [vmem:[%s3 + $0x308] sm:$0xff]
  %v1256 = vld [vmem:[%s3 + $0x310] sm:$0xff]
  %v1257 = vld [vmem:[%s3 + $0x318] sm:$0xff]
  %v1258 = vld [vmem:[%s3 + $0x320] sm:$0xff]
  %v1259 = vld [vmem:[%s3 + $0x328] sm:$0xff]
  %v1260 = vld [vmem:[%s3 + $0x330] sm:$0xff]
  %v1261 = vld [vmem:[%s3 + $0x338] sm:$0xff]
  %v1262 = vld [vmem:[%s3 + $0x340] sm:$0xff]
  %v1263 = vld [vmem:[%s3 + $0x348] sm:$0xff]
  %v1264 = vld [vmem:[%s3 + $0x350] sm:$0xff]
  %v1265 = vld [vmem:[%s3 + $0x358] sm:$0xff]
  %v1266 = vld [vmem:[%s3 + $0x360] sm:$0xff]
  %v1267 = vld [vmem:[%s3 + $0x368] sm:$0xff]
  %v1268 = vld [vmem:[%s3 + $0x370] sm:$0xff]
  %v1269 = vld [vmem:[%s3 + $0x378] sm:$0xff]
  %v1270 = vld [vmem:[%s3 + $0x380] sm:$0xff]
  %v1271 = vld [vmem:[%s3 + $0x388] sm:$0xff]
  %v1272 = vld [vmem:[%s3 + $0x390] sm:$0xff]
  %v1273 = vld [vmem:[%s3 + $0x398] sm:$0xff]
  %v1274 = vld [vmem:[%s3 + $0x3a0] sm:$0xff]
  %v1275 = vld [vmem:[%s3 + $0x3a8] sm:$0xff]
  %v1276 = vld [vmem:[%s3 + $0x3b0] sm:$0xff]
  %v1277 = vld [vmem:[%s3 + $0x3b8] sm:$0xff]
  %v1278 = vld [vmem:[%s3 + $0x3c0] sm:$0xff]
  %v1279 = vld [vmem:[%s3 + $0x3c8] sm:$0xff]
  %v1280 = vld [vmem:[%s3 + $0x3d0] sm:$0xff]
  %v1281 = vld [vmem:[%s3 + $0x3d8] sm:$0xff]
  %v1282 = vld [vmem:[%s3 + $0x3e0] sm:$0xff]
  %v1283 = vld [vmem:[%s3 + $0x3e8] sm:$0xff]
  %v1284 = vld [vmem:[%s3 + $0x3f0] sm:$0xff]
  %v1285 = vld [vmem:[%s3 + $0x3f8] sm:$0xff]
  %v1286 = vld [vmem:[%s4] sm:$0x1]
  %v1288 = vlaneseq
  %v1289 = vshrl.u32 %v1288, 7
  %v1290 = vsub.s32 0, %v1289
  %v1291 = vrot.slane %v1286, %v1290
  %1293 = vmatprep.subr.mxu0 0.0
  %1294 = vmatpush1.msra.mxu0 %v1173
  %1295 = vmatprep.subr.mxu0 0.0
  %1296 = vmatpush1.msra.mxu0 %v1172
  %1297 = vmatprep.subr.mxu0 0.0
  %1298 = vmatpush1.msra.mxu0 %v1171
  %1299 = vmatprep.subr.mxu0 0.0
  %1300 = vmatpush1.msra.mxu0 %v1170
  %1301 = vmatprep.subr.mxu0 0.0
  %1302 = vmatpush1.msra.mxu0 %v1169
  %1303 = vmatprep.subr.mxu0 0.0
  %1304 = vmatpush1.msra.mxu0 %v1168
  %1305 = vmatprep.subr.mxu0 0.0
  %1306 = vmatpush1.msra.mxu0 %v1167
  %1307 = vmatprep.subr.mxu0 0.0
  %1308 = vmatpush1.msra.mxu0 %v1166
  %1309 = vmatprep.subr.mxu0 0.0
  %1310 = vmatpush1.msra.mxu0 %v1165
  %1311 = vmatprep.subr.mxu0 0.0
  %1312 = vmatpush1.msra.mxu0 %v1164
  %1313 = vmatprep.subr.mxu0 0.0
  %1314 = vmatpush1.msra.mxu0 %v1163
  %1315 = vmatprep.subr.mxu0 0.0
  %1316 = vmatpush1.msra.mxu0 %v1162
  %1317 = vmatprep.subr.mxu0 0.0
  %1318 = vmatpush1.msra.mxu0 %v1161
  %1319 = vmatprep.subr.mxu0 0.0
  %1320 = vmatpush1.msra.mxu0 %v1160
  %1321 = vmatprep.subr.mxu0 0.0
  %1322 = vmatpush1.msra.mxu0 %v1159
  %1323 = vmatprep.subr.mxu0 0.0
  %1324 = vmatpush1.msra.mxu0 %v1158
  %1325 = vmatprep.subr.mxu0 0.0
  %1326 = vmatpush2.msra.mxu0 %v1189
  %1327 = vmatprep.subr.mxu0 0.0
  %1328 = vmatpush2.msra.mxu0 %v1188
  %1329 = vmatprep.subr.mxu0 0.0
  %1330 = vmatpush2.msra.mxu0 %v1187
  %1331 = vmatprep.subr.mxu0 0.0
  %1332 = vmatpush2.msra.mxu0 %v1186
  %1333 = vmatprep.subr.mxu0 0.0
  %1334 = vmatpush2.msra.mxu0 %v1185
  %1335 = vmatprep.subr.mxu0 0.0
  %1336 = vmatpush2.msra.mxu0 %v1184
  %1337 = vmatprep.subr.mxu0 0.0
  %1338 = vmatpush2.msra.mxu0 %v1183
  %1339 = vmatprep.subr.mxu0 0.0
  %1340 = vmatpush2.msra.mxu0 %v1182
  %1341 = vmatprep.subr.mxu0 0.0
  %1342 = vmatpush2.msra.mxu0 %v1181
  %1343 = vmatprep.subr.mxu0 0.0
  %1344 = vmatpush2.msra.mxu0 %v1180
  %1345 = vmatprep.subr.mxu0 0.0
  %1346 = vmatpush2.msra.mxu0 %v1179
  %1347 = vmatprep.subr.mxu0 0.0
  %1348 = vmatpush2.msra.mxu0 %v1178
  %1349 = vmatprep.subr.mxu0 0.0
  %1350 = vmatpush2.msra.mxu0 %v1177
  %1351 = vmatprep.subr.mxu0 0.0
  %1352 = vmatpush2.msra.mxu0 %v1176
  %1353 = vmatprep.subr.mxu0 0.0
  %1354 = vmatpush2.msra.mxu0 %v1175
  %1355 = vmatprep.subr.mxu0 0.0
  %1356 = vmatpush2.msra.mxu0 %v1174
  %1357 = vmatprep.mubr.f32.mxu0 %v1151
  %1358 = vmatmul.mubr.f32.gmra.mxu0 %v1150
  %v1359 = vpop.f32.mrf.mxu0
  %v1360 = vadd.f32 %v1291, %v1359
  %v1361 = vpop.f32.mrf.mxu0
  %1362 = vdwg.mxu0
  %1363 = vmatprep.subr.mxu0 0.0
  %1364 = vmatpush1.msra.mxu0 %v1205
  %1365 = vmatprep.subr.mxu0 0.0
  %1366 = vmatpush1.msra.mxu0 %v1204
  %1367 = vmatprep.subr.mxu0 0.0
  %1368 = vmatpush1.msra.mxu0 %v1203
  %1369 = vmatprep.subr.mxu0 0.0
  %1370 = vmatpush1.msra.mxu0 %v1202
  %1371 = vmatprep.subr.mxu0 0.0
  %1372 = vmatpush1.msra.mxu0 %v1201
  %1373 = vmatprep.subr.mxu0 0.0
  %1374 = vmatpush1.msra.mxu0 %v1200
  %1375 = vmatprep.subr.mxu0 0.0
  %1376 = vmatpush1.msra.mxu0 %v1199
  %1377 = vmatprep.subr.mxu0 0.0
  %1378 = vmatpush1.msra.mxu0 %v1198
  %1379 = vmatprep.subr.mxu0 0.0
  %1380 = vmatpush1.msra.mxu0 %v1197
  %1381 = vmatprep.subr.mxu0 0.0
  %1382 = vmatpush1.msra.mxu0 %v1196
  %1383 = vmatprep.subr.mxu0 0.0
  %1384 = vmatpush1.msra.mxu0 %v1195
  %1385 = vmatprep.subr.mxu0 0.0
  %1386 = vmatpush1.msra.mxu0 %v1194
  %1387 = vmatprep.subr.mxu0 0.0
  %1388 = vmatpush1.msra.mxu0 %v1193
  %1389 = vmatprep.subr.mxu0 0.0
  %1390 = vmatpush1.msra.mxu0 %v1192
  %1391 = vmatprep.subr.mxu0 0.0
  %1392 = vmatpush1.msra.mxu0 %v1191
  %1393 = vmatprep.subr.mxu0 0.0
  %1394 = vmatpush1.msra.mxu0 %v1190
  %1395 = vmatprep.subr.mxu0 0.0
  %1396 = vmatpush2.msra.mxu0 %v1221
  %1397 = vmatprep.subr.mxu0 0.0
  %1398 = vmatpush2.msra.mxu0 %v1220
  %1399 = vmatprep.subr.mxu0 0.0
  %1400 = vmatpush2.msra.mxu0 %v1219
  %1401 = vmatprep.subr.mxu0 0.0
  %1402 = vmatpush2.msra.mxu0 %v1218
  %1403 = vmatprep.subr.mxu0 0.0
  %1404 = vmatpush2.msra.mxu0 %v1217
  %1405 = vmatprep.subr.mxu0 0.0
  %1406 = vmatpush2.msra.mxu0 %v1216
  %1407 = vmatprep.subr.mxu0 0.0
  %1408 = vmatpush2.msra.mxu0 %v1215
  %1409 = vmatprep.subr.mxu0 0.0
  %1410 = vmatpush2.msra.mxu0 %v1214
  %1411 = vmatprep.subr.mxu0 0.0
  %1412 = vmatpush2.msra.mxu0 %v1213
  %1413 = vmatprep.subr.mxu0 0.0
  %1414 = vmatpush2.msra.mxu0 %v1212
  %1415 = vmatprep.subr.mxu0 0.0
  %1416 = vmatpush2.msra.mxu0 %v1211
  %1417 = vmatprep.subr.mxu0 0.0
  %1418 = vmatpush2.msra.mxu0 %v1210
  %1419 = vmatprep.subr.mxu0 0.0
  %1420 = vmatpush2.msra.mxu0 %v1209
  %1421 = vmatprep.subr.mxu0 0.0
  %1422 = vmatpush2.msra.mxu0 %v1208
  %1423 = vmatprep.subr.mxu0 0.0
  %1424 = vmatpush2.msra.mxu0 %v1207
  %1425 = vmatprep.subr.mxu0 0.0
  %1426 = vmatpush2.msra.mxu0 %v1206
  %1427 = vmatprep.mubr.f32.mxu0 %v1153
  %1428 = vmatmul.mubr.f32.gmra.mxu0 %v1152
  %v1429 = vpop.f32.mrf.mxu0
  %v1430 = vadd.f32 %v1360, %v1429
  %v1431 = vpop.f32.mrf.mxu0
  %1432 = vdwg.mxu0
  %1433 = vmatprep.subr.mxu0 0.0
  %1434 = vmatpush1.msra.mxu0 %v1237
  %1435 = vmatprep.subr.mxu0 0.0
  %1436 = vmatpush1.msra.mxu0 %v1236
  %1437 = vmatprep.subr.mxu0 0.0
  %1438 = vmatpush1.msra.mxu0 %v1235
  %1439 = vmatprep.subr.mxu0 0.0
  %1440 = vmatpush1.msra.mxu0 %v1234
  %1441 = vmatprep.subr.mxu0 0.0
  %1442 = vmatpush1.msra.mxu0 %v1233
  %1443 = vmatprep.subr.mxu0 0.0
  %1444 = vmatpush1.msra.mxu0 %v1232
  %1445 = vmatprep.subr.mxu0 0.0
  %1446 = vmatpush1.msra.mxu0 %v1231
  %1447 = vmatprep.subr.mxu0 0.0
  %1448 = vmatpush1.msra.mxu0 %v1230
  %1449 = vmatprep.subr.mxu0 0.0
  %1450 = vmatpush1.msra.mxu0 %v1229
  %1451 = vmatprep.subr.mxu0 0.0
  %1452 = vmatpush1.msra.mxu0 %v1228
  %1453 = vmatprep.subr.mxu0 0.0
  %1454 = vmatpush1.msra.mxu0 %v1227
  %1455 = vmatprep.subr.mxu0 0.0
  %1456 = vmatpush1.msra.mxu0 %v1226
  %1457 = vmatprep.subr.mxu0 0.0
  %1458 = vmatpush1.msra.mxu0 %v1225
  %1459 = vmatprep.subr.mxu0 0.0
  %1460 = vmatpush1.msra.mxu0 %v1224
  %1461 = vmatprep.subr.mxu0 0.0
  %1462 = vmatpush1.msra.mxu0 %v1223
  %1463 = vmatprep.subr.mxu0 0.0
  %1464 = vmatpush1.msra.mxu0 %v1222
  %1465 = vmatprep.subr.mxu0 0.0
  %1466 = vmatpush2.msra.mxu0 %v1253
  %1467 = vmatprep.subr.mxu0 0.0
  %1468 = vmatpush2.msra.mxu0 %v1252
  %1469 = vmatprep.subr.mxu0 0.0
  %1470 = vmatpush2.msra.mxu0 %v1251
  %1471 = vmatprep.subr.mxu0 0.0
  %1472 = vmatpush2.msra.mxu0 %v1250
  %1473 = vmatprep.subr.mxu0 0.0
  %1474 = vmatpush2.msra.mxu0 %v1249
  %1475 = vmatprep.subr.mxu0 0.0
  %1476 = vmatpush2.msra.mxu0 %v1248
  %1477 = vmatprep.subr.mxu0 0.0
  %1478 = vmatpush2.msra.mxu0 %v1247
  %1479 = vmatprep.subr.mxu0 0.0
  %1480 = vmatpush2.msra.mxu0 %v1246
  %1481 = vmatprep.subr.mxu0 0.0
  %1482 = vmatpush2.msra.mxu0 %v1245
  %1483 = vmatprep.subr.mxu0 0.0
  %1484 = vmatpush2.msra.mxu0 %v1244
  %1485 = vmatprep.subr.mxu0 0.0
  %1486 = vmatpush2.msra.mxu0 %v1243
  %1487 = vmatprep.subr.mxu0 0.0
  %1488 = vmatpush2.msra.mxu0 %v1242
  %1489 = vmatprep.subr.mxu0 0.0
  %1490 = vmatpush2.msra.mxu0 %v1241
  %1491 = vmatprep.subr.mxu0 0.0
  %1492 = vmatpush2.msra.mxu0 %v1240
  %1493 = vmatprep.subr.mxu0 0.0
  %1494 = vmatpush2.msra.mxu0 %v1239
  %1495 = vmatprep.subr.mxu0 0.0
  %1496 = vmatpush2.msra.mxu0 %v1238
  %1497 = vmatprep.mubr.f32.mxu0 %v1155
  %1498 = vmatmul.mubr.f32.gmra.mxu0 %v1154
  %v1499 = vpop.f32.mrf.mxu0
  %v1500 = vadd.f32 %v1430, %v1499
  %v1501 = vpop.f32.mrf.mxu0
  %1502 = vdwg.mxu0
  %1503 = vmatprep.subr.mxu0 0.0
  %1504 = vmatpush1.msra.mxu0 %v1269
  %1505 = vmatprep.subr.mxu0 0.0
  %1506 = vmatpush1.msra.mxu0 %v1268
  %1507 = vmatprep.subr.mxu0 0.0
  %1508 = vmatpush1.msra.mxu0 %v1267
  %1509 = vmatprep.subr.mxu0 0.0
  %1510 = vmatpush1.msra.mxu0 %v1266
  %1511 = vmatprep.subr.mxu0 0.0
  %1512 = vmatpush1.msra.mxu0 %v1265
  %1513 = vmatprep.subr.mxu0 0.0
  %1514 = vmatpush1.msra.mxu0 %v1264
  %1515 = vmatprep.subr.mxu0 0.0
  %1516 = vmatpush1.msra.mxu0 %v1263
  %1517 = vmatprep.subr.mxu0 0.0
  %1518 = vmatpush1.msra.mxu0 %v1262
  %1519 = vmatprep.subr.mxu0 0.0
  %1520 = vmatpush1.msra.mxu0 %v1261
  %1521 = vmatprep.subr.mxu0 0.0
  %1522 = vmatpush1.msra.mxu0 %v1260
  %1523 = vmatprep.subr.mxu0 0.0
  %1524 = vmatpush1.msra.mxu0 %v1259
  %1525 = vmatprep.subr.mxu0 0.0
  %1526 = vmatpush1.msra.mxu0 %v1258
  %1527 = vmatprep.subr.mxu0 0.0
  %1528 = vmatpush1.msra.mxu0 %v1257
  %1529 = vmatprep.subr.mxu0 0.0
  %1530 = vmatpush1.msra.mxu0 %v1256
  %1531 = vmatprep.subr.mxu0 0.0
  %1532 = vmatpush1.msra.mxu0 %v1255
  %1533 = vmatprep.subr.mxu0 0.0
  %1534 = vmatpush1.msra.mxu0 %v1254
  %1535 = vmatprep.subr.mxu0 0.0
  %1536 = vmatpush2.msra.mxu0 %v1285
  %1537 = vmatprep.subr.mxu0 0.0
  %1538 = vmatpush2.msra.mxu0 %v1284
  %1539 = vmatprep.subr.mxu0 0.0
  %1540 = vmatpush2.msra.mxu0 %v1283
  %1541 = vmatprep.subr.mxu0 0.0
  %1542 = vmatpush2.msra.mxu0 %v1282
  %1543 = vmatprep.subr.mxu0 0.0
  %1544 = vmatpush2.msra.mxu0 %v1281
  %1545 = vmatprep.subr.mxu0 0.0
  %1546 = vmatpush2.msra.mxu0 %v1280
  %1547 = vmatprep.subr.mxu0 0.0
  %1548 = vmatpush2.msra.mxu0 %v1279
  %1549 = vmatprep.subr.mxu0 0.0
  %1550 = vmatpush2.msra.mxu0 %v1278
  %1551 = vmatprep.subr.mxu0 0.0
  %1552 = vmatpush2.msra.mxu0 %v1277
  %1553 = vmatprep.subr.mxu0 0.0
  %1554 = vmatpush2.msra.mxu0 %v1276
  %1555 = vmatprep.subr.mxu0 0.0
  %1556 = vmatpush2.msra.mxu0 %v1275
  %1557 = vmatprep.subr.mxu0 0.0
  %1558 = vmatpush2.msra.mxu0 %v1274
  %1559 = vmatprep.subr.mxu0 0.0
  %1560 = vmatpush2.msra.mxu0 %v1273
  %1561 = vmatprep.subr.mxu0 0.0
  %1562 = vmatpush2.msra.mxu0 %v1272
  %1563 = vmatprep.subr.mxu0 0.0
  %1564 = vmatpush2.msra.mxu0 %v1271
  %1565 = vmatprep.subr.mxu0 0.0
  %1566 = vmatpush2.msra.mxu0 %v1270
  %1567 = vmatprep.mubr.f32.mxu0 %v1157
  %1568 = vmatmul.mubr.f32.gmra.mxu0 %v1156
  %v1569 = vpop.f32.mrf.mxu0
  %v1570 = vadd.f32 %v1500, %v1569
  %v1571 = vpop.f32.mrf.mxu0
  %1572 = vdwg.mxu0
  %v1573 = vsub.f32 0.0, %v1570
  %v1574 = vmul.f32 %v1573, 1.442695
  %v1575 = vpow.pop %v1574
  %v1576 = vadd.f32 %v1575, 1.0
  %v1577 = vrcp.pop %v1576
  %1578 = vst [vmem:[%s5] sm:$0xf] %v1577
  // Predicated region
  $region22: #{edge_regression_mlp.1} parent=0 // pred_check
    _
  $region23: #{edge_regression_mlp.1} parent=0 // pred_check_branch
    %1580 = sbr.rel (0) target = $region25
  $region24: #{edge_regression_mlp.1} parent=0 // pred_region
    _
  $region25: #{edge_regression_mlp.1} parent=0 // pred_fallthru
    _
  // Predicated region
  $region26: #{edge_regression_mlp.1} parent=0 // pred_check
    _
  $region27: #{edge_regression_mlp.1} parent=0 // pred_check_branch
    %1582 = sbr.rel (0) target = $region29
  $region28: #{edge_regression_mlp.1} parent=0 // pred_region
    _
  $region29: #{edge_regression_mlp.1} parent=0 // pred_fallthru
    _

</llo_original>
